<compile_context>
chip_gen: v6e
topology: v6e:2x2x1
jax: 0.10.0
libtpu: 0.0.40
codegen_flags: <defaults>
</compile_context>

<pallas_src>
import math

import jax
import jax.numpy as jnp
from jax.experimental import pallas as pl
from jax.experimental.pallas import tpu as pltpu

PAD = 128  # lane-dense padding for all output (N) channel dims


def _round_up(n, m):
    return ((n + m - 1) // m) * m


def _k_pad(fan_in):
    """Pad a contraction (fan-in) dim to the next power of two in [8, 128]."""
    p = 8
    while p < fan_in:
        p *= 2
    assert p <= PAD, fan_in
    return p


def _bf16_round(w):
    return w.astype(jnp.bfloat16).astype(jnp.float32)


# ----------------------------- fused Pallas kernel -------------------------- #

def make_fused_kernel(plan, n_slabs, n_chains):
    """plan: static tuple of ("proj"|"id", spec1, spec2) blocks + ("fc", spec).
    spec = (slab_idx, col_off, width, bias_off, k_rows) -- all static ints."""

    def kernel(x_ref, *refs):
        slab_refs = refs[:n_slabs]
        b_ref = refs[n_slabs]                   # (1, total_cols) f32
        logits_ref = refs[n_slabs + 1]
        feat_ref = refs[n_slabs + 2]

        def matvec(x, spec):
            si, off, width, boff, k = spec
            lhs = x.astype(jnp.bfloat16)        # native bf16 MXU path
            if k < lhs.shape[1]:
                lhs = lhs[:, :k]                # drop zero padding lanes (de-padded K)
            # ref-fed RHS: stream the (k, width) bf16 tile straight into the dot
            w = slab_refs[si][:, off:off + width]
            acc = jnp.dot(lhs, w, preferred_element_type=jnp.float32)
            return acc + b_ref[:, boff:boff + width]   # (1,width) sublane bcast

        x_full = x_ref[...]                     # (TB, PAD) f32
        tb = x_full.shape[0]
        step = tb // n_chains
        parts = [x_full[c * step:(c + 1) * step] for c in range(n_chains)]

        row = 0
        for x in parts:                         # independent chains -> MXU overlap
            for entry in plan:
                kind = entry[0]
                if kind == "proj":
                    # one MXU push: [left layer-1 | projection shortcut]
                    both = matvec(x, entry[1])              # (rows, 2*PAD)
                    h = jnp.maximum(both[:, :PAD], 0.0)     # Linear+BN+ReLU (+Dropout=id)
                    res = both[:, PAD:]                     # shortcut Linear+BN
                    x = jnp.maximum(matvec(h, entry[2]) + res, 0.0)
                elif kind == "id":
                    h = jnp.maximum(matvec(x, entry[1]), 0.0)
                    x = jnp.maximum(matvec(h, entry[2]) + x, 0.0)
                else:  # "fc" head
                    feat_ref[row:row + step, :] = x
                    logits_ref[row:row + step, :] = matvec(x, entry[1])
            row += step

    return kernel


# ----------------------------- parameter setup ------------------------------ #

def _linear_params(key, fan_in, fan_out):
    """PyTorch nn.Linear default init: U(-1/sqrt(fan_in), 1/sqrt(fan_in))."""
    k_w, k_b = jax.random.split(key)
    bound = 1.0 / math.sqrt(fan_in)
    w = jax.random.uniform(k_w, (fan_in, fan_out), jnp.float32, -bound, bound)
    b = jax.random.uniform(k_b, (fan_out,), jnp.float32, -bound, bound)
    return w, b


def _fold_bn(w, b, eps=1e-5):
    """Fold eval-mode BatchNorm1d into the preceding Linear.

    Uses default-init running stats (gamma=1, beta=0, mean=0, var=1).
    TODO(synk): for a trained checkpoint, pass the real running stats / affine
    params here; train-mode (batch-stat) BN is not reproduced.
    """
    c = w.shape[1]
    gamma = jnp.ones((c,), jnp.float32)
    beta = jnp.zeros((c,), jnp.float32)
    running_mean = jnp.zeros((c,), jnp.float32)
    running_var = jnp.ones((c,), jnp.float32)
    scale = gamma / jnp.sqrt(running_var + eps)
    shift = beta - running_mean * scale
    return w * scale[None, :], b * scale + shift


def _pad_cols(w, cols):
    return jnp.pad(w, ((0, 0), (0, cols - w.shape[1])))


def _pad_vec(b, cols):
    return jnp.pad(b, (0, cols - b.shape[0]))


class _SlabBuilder:
    """Packs column-padded weights into one bf16 slab per padded fan-in and
    all biases into a single (1, total) f32 slab."""

    def __init__(self):
        self._w = {}        # k_pad -> list of (k_pad, width) f32 arrays
        self._w_off = {}    # k_pad -> running column offset
        self._b = []
        self._b_off = 0

    def add(self, w, b):
        """w: (fan_in, width) f32, width already a multiple of 128; b: (width,)."""
        fan_in, width = w.shape
        k = _k_pad(fan_in)
        wp = jnp.pad(w, ((0, k - fan_in), (0, 0)))
        off = self._w_off.get(k, 0)
        self._w.setdefault(k, []).append(wp)
        self._w_off[k] = off + width
        boff = self._b_off
        self._b.append(b)
        self._b_off += width
        return (k, off, width, boff)

    def finalize(self):
        keys = sorted(self._w)
        slabs = tuple(jnp.concatenate(self._w[k], axis=1).astype(jnp.bfloat16)
                      for k in keys)
        bias = jnp.concatenate(self._b)[None, :].astype(jnp.float32)
        key_to_idx = {k: i for i, k in enumerate(keys)}
        return key_to_idx, slabs, bias


def make_resnet1d_params(key, channels, indim, num_class, blocks):
    """Returns (plan, weight_slabs, bias_slab, ref_params)."""
    builder = _SlabBuilder()
    raw_plan = []
    ref_params = []
    in_c = indim
    for block_num, out_c in zip(blocks, channels):
        for i in range(block_num):
            key, k1, k2, ks = jax.random.split(key, 4)
            w1, b1 = _fold_bn(*_linear_params(k1, in_c, out_c))
            w2, b2 = _fold_bn(*_linear_params(k2, out_c, out_c))
            if i == 0:  # first block of each layer: projection shortcut
                ws, bs = _fold_bn(*_linear_params(ks, in_c, out_c))
                w1s = jnp.concatenate([_pad_cols(w1, PAD), _pad_cols(ws, PAD)], axis=1)
                b1s = jnp.concatenate([_pad_vec(b1, PAD), _pad_vec(bs, PAD)])
                spec1 = builder.add(w1s, b1s)
                spec2 = builder.add(_pad_cols(w2, PAD), _pad_vec(b2, PAD))
                raw_plan.append(("proj", spec1, spec2))
            else:
                ws, bs = None, None
                spec1 = builder.add(_pad_cols(w1, PAD), _pad_vec(b1, PAD))
                spec2 = builder.add(_pad_cols(w2, PAD), _pad_vec(b2, PAD))
                raw_plan.append(("id", spec1, spec2))
            ref_params.append(dict(
                w1=_bf16_round(w1), b1=b1, w2=_bf16_round(w2), b2=b2,
                ws=None if ws is None else _bf16_round(ws), bs=bs))
            in_c = out_c

    key, kf = jax.random.split(key)
    w_fc, b_fc = _linear_params(kf, channels[-1], num_class)
    spec_fc = builder.add(_pad_cols(w_fc, PAD), _pad_vec(b_fc, PAD))
    raw_plan.append(("fc", spec_fc))
    ref_params.append(dict(w=_bf16_round(w_fc), b=b_fc))

    key_to_idx, slabs, bias = builder.finalize()

    def resolve(spec):
        k, off, width, boff = spec
        return (key_to_idx[k], off, width, boff, k)

    plan = tuple((e[0],) + tuple(resolve(s) for s in e[1:]) for e in raw_plan)
    return plan, slabs, bias, ref_params


# ----------------------------- forward pass --------------------------------- #

def resnet1d_forward(plan, slabs, bias, x, num_class, feat_dim, tile_b=256):
    """x: (B, indim) f32. Returns (logits (B, num_class), features (B, feat_dim))."""
    assert x.ndim == 2
    B, D = x.shape
    x_pad = jnp.pad(x.astype(jnp.float32), ((0, 0), (0, PAD - D)))

    tb = min(_round_up(B, 8), tile_b)       # batch tile
    b_pad = _round_up(B, tb)
    if b_pad > B:
        x_pad = jnp.pad(x_pad, ((0, b_pad - B), (0, 0)))

    # Small tiles: two independent sub-chains hide MXU push/pop latency.
    # Big tiles (>=256 rows) already fill the MXU; one chain keeps vregs low.
    n_chains = 2 if (16 <= tb <= 128 and tb % 16 == 0) else 1

    kernel = make_fused_kernel(plan, len(slabs), n_chains)

    in_specs = [pl.BlockSpec((tb, PAD), lambda i: (i, 0))]                    # x streams
    in_specs += [pl.BlockSpec(s.shape, lambda i: (0, 0)) for s in slabs]      # weights resident
    in_specs += [pl.BlockSpec(bias.shape, lambda i: (0, 0))]                  # bias resident
    out_specs = (pl.BlockSpec((tb, PAD), lambda i: (i, 0)),
                 pl.BlockSpec((tb, PAD), lambda i: (i, 0)))

    logits_pad, feat_pad = pl.pallas_call(
        kernel,
        out_shape=(jax.ShapeDtypeStruct((b_pad, PAD), jnp.float32),
                   jax.ShapeDtypeStruct((b_pad, PAD), jnp.float32)),
        grid=(b_pad // tb,),
        in_specs=in_specs,
        out_specs=out_specs,
        compiler_params=pltpu.CompilerParams(
            dimension_semantics=("parallel",),       # v7x: both TCs take batch tiles
            vmem_limit_bytes=8 * 1024 * 1024),       # right-sized (~2 MiB footprint)
    )(x_pad, *slabs, bias)

    return logits_pad[:B, :num_class], feat_pad[:B, :feat_dim]


# ----------------------------- pure-JAX reference ---------------------------- #

def resnet1d_reference(ref_params, x):
    h = x
    for blk in ref_params[:-1]:
        left = jnp.maximum(h @ blk["w1"] + blk["b1"], 0.0)   # Dropout = identity (eval)
        left = left @ blk["w2"] + blk["b2"]
        res = h if blk["ws"] is None else h @ blk["ws"] + blk["bs"]
        h = jnp.maximum(left + res, 0.0)
    fc = ref_params[-1]
    return h @ fc["w"] + fc["b"], h


# ----------------------------- main ------------------------------------------ #

if __name__ == "__main__":
    channels = [16, 32, 64]
    indim = 103
    num_class = 9
    blocks = [2, 2, 2]
    batch = 32   # small; exercises the 2-chain tile path (grid handles larger B)

    root = jax.random.PRNGKey(0)
    k_param, k_x = jax.random.split(root)

    plan, slabs, bias, ref_params = make_resnet1d_params(
        k_param, channels, indim, num_class, blocks)
    x = jax.random.normal(k_x, (batch, indim), jnp.float32)

    logits, feats = resnet1d_forward(plan, slabs, bias, x, num_class, channels[-1])
    jax.block_until_ready((logits, feats))

    assert logits.shape == (batch, num_class), logits.shape
    assert feats.shape == (batch, channels[-1]), feats.shape
    assert bool(jnp.all(jnp.isfinite(logits))) and bool(jnp.all(jnp.isfinite(feats)))

    ref_logits, ref_feats = resnet1d_reference(ref_params, x)
    assert jnp.allclose(logits, ref_logits, rtol=5e-2, atol=5e-2), \
        float(jnp.max(jnp.abs(logits - ref_logits)))
    assert jnp.allclose(feats, ref_feats, rtol=5e-2, atol=5e-2), \
        float(jnp.max(jnp.abs(feats - ref_feats)))

    print("KERNEL_OK")
</pallas_src>

<mosaic_0001>
module attributes {stable_mosaic.version = 11 : i64} {
  func.func @kernel(%arg0: i32, %arg1: memref<32x128xf32, #tpu.memory_space<vmem>>, %arg2: memref<16x640xbf16, #tpu.memory_space<vmem>>, %arg3: memref<32x640xbf16, #tpu.memory_space<vmem>>, %arg4: memref<64x512xbf16, #tpu.memory_space<vmem>>, %arg5: memref<128x256xbf16, #tpu.memory_space<vmem>>, %arg6: memref<1x2048xf32, #tpu.memory_space<vmem>>, %arg7: memref<32x128xf32, #tpu.memory_space<vmem>>, %arg8: memref<32x128xf32, #tpu.memory_space<vmem>>) attributes {dimension_semantics = [#tpu.dimension_semantics<parallel>], iteration_bounds = array<i64: 1>, scalar_prefetch = 0 : i64, scratch_operands = 0 : i64, tpu.core_type = #tpu.core_type<tc>, window_params = [{transform_indices = @transform_0, window_bounds = array<i64: 32, 128>}, {pipeline_mode = #tpu.pipeline_mode<synchronous>, transform_indices = @transform_1, window_bounds = array<i64: 16, 640>}, {pipeline_mode = #tpu.pipeline_mode<synchronous>, transform_indices = @transform_2, window_bounds = array<i64: 32, 640>}, {pipeline_mode = #tpu.pipeline_mode<synchronous>, transform_indices = @transform_3, window_bounds = array<i64: 64, 512>}, {pipeline_mode = #tpu.pipeline_mode<synchronous>, transform_indices = @transform_4, window_bounds = array<i64: 128, 256>}, {pipeline_mode = #tpu.pipeline_mode<synchronous>, transform_indices = @transform_5, window_bounds = array<i64: 1, 2048>}, {transform_indices = @transform_6, window_bounds = array<i64: 32, 128>}, {transform_indices = @transform_7, window_bounds = array<i64: 32, 128>}]} {
    %c0 = arith.constant 0 : index
    %c0_0 = arith.constant 0 : index
    %0 = vector.load %arg1[%c0, %c0_0] : memref<32x128xf32, #tpu.memory_space<vmem>>, vector<32x128xf32>
    %1 = vector.extract_strided_slice %0 {offsets = [0, 0], sizes = [16, 128], strides = [1, 1]} : vector<32x128xf32> to vector<16x128xf32>
    %2 = vector.extract_strided_slice %0 {offsets = [16, 0], sizes = [16, 128], strides = [1, 1]} : vector<32x128xf32> to vector<16x128xf32>
    %3 = arith.truncf %1 : vector<16x128xf32> to vector<16x128xbf16>
    %c0_1 = arith.constant 0 : index
    %c0_2 = arith.constant 0 : index
    %4 = vector.load %arg5[%c0_1, %c0_2] : memref<128x256xbf16, #tpu.memory_space<vmem>>, vector<128x256xbf16>
    %cst = arith.constant dense<0.000000e+00> : vector<16x256xf32>
    %5 = tpu.matmul %3, %4, %cst {dimension_numbers = #tpu.dot_dimension_numbers<[1], [0], [0], [1], [0, 0, 1, 1], [], []>} : vector<16x128xbf16>, vector<128x256xbf16>, vector<16x256xf32> -> vector<16x256xf32>
    %c0_3 = arith.constant 0 : index
    %c0_4 = arith.constant 0 : index
    %6 = vector.load %arg6[%c0_3, %c0_4] : memref<1x2048xf32, #tpu.memory_space<vmem>>, vector<1x256xf32>
    %7 = vector.broadcast %6 : vector<1x256xf32> to vector<16x256xf32>
    %8 = arith.addf %5, %7 : vector<16x256xf32>
    %9 = vector.extract_strided_slice %8 {offsets = [0, 0], sizes = [16, 128], strides = [1, 1]} : vector<16x256xf32> to vector<16x128xf32>
    %cst_5 = arith.constant 0.000000e+00 : f32
    %10 = vector.broadcast %cst_5 : f32 to vector<16x128xf32>
    %11 = arith.maximumf %9, %10 : vector<16x128xf32>
    %12 = vector.extract_strided_slice %8 {offsets = [0, 128], sizes = [16, 128], strides = [1, 1]} : vector<16x256xf32> to vector<16x128xf32>
    %13 = arith.truncf %11 : vector<16x128xf32> to vector<16x128xbf16>
    %14 = vector.extract_strided_slice %13 {offsets = [0, 0], sizes = [16, 16], strides = [1, 1]} : vector<16x128xbf16> to vector<16x16xbf16>
    %c0_6 = arith.constant 0 : index
    %c0_7 = arith.constant 0 : index
    %15 = vector.load %arg2[%c0_6, %c0_7] : memref<16x640xbf16, #tpu.memory_space<vmem>>, vector<16x128xbf16>
    %cst_8 = arith.constant dense<0.000000e+00> : vector<16x128xf32>
    %16 = tpu.matmul %14, %15, %cst_8 {dimension_numbers = #tpu.dot_dimension_numbers<[1], [0], [0], [1], [0, 0, 1, 1], [], []>} : vector<16x16xbf16>, vector<16x128xbf16>, vector<16x128xf32> -> vector<16x128xf32>
    %c0_9 = arith.constant 0 : index
    %c256 = arith.constant 256 : index
    %17 = vector.load %arg6[%c0_9, %c256] : memref<1x2048xf32, #tpu.memory_space<vmem>>, vector<1x128xf32>
    %18 = vector.broadcast %17 : vector<1x128xf32> to vector<16x128xf32>
    %19 = arith.addf %16, %18 : vector<16x128xf32>
    %20 = arith.addf %19, %12 : vector<16x128xf32>
    %cst_10 = arith.constant 0.000000e+00 : f32
    %21 = vector.broadcast %cst_10 : f32 to vector<16x128xf32>
    %22 = arith.maximumf %20, %21 : vector<16x128xf32>
    %23 = arith.truncf %22 : vector<16x128xf32> to vector<16x128xbf16>
    %24 = vector.extract_strided_slice %23 {offsets = [0, 0], sizes = [16, 16], strides = [1, 1]} : vector<16x128xbf16> to vector<16x16xbf16>
    %c0_11 = arith.constant 0 : index
    %c128 = arith.constant 128 : index
    %25 = vector.load %arg2[%c0_11, %c128] : memref<16x640xbf16, #tpu.memory_space<vmem>>, vector<16x128xbf16>
    %cst_12 = arith.constant dense<0.000000e+00> : vector<16x128xf32>
    %26 = tpu.matmul %24, %25, %cst_12 {dimension_numbers = #tpu.dot_dimension_numbers<[1], [0], [0], [1], [0, 0, 1, 1], [], []>} : vector<16x16xbf16>, vector<16x128xbf16>, vector<16x128xf32> -> vector<16x128xf32>
    %c0_13 = arith.constant 0 : index
    %c384 = arith.constant 384 : index
    %27 = vector.load %arg6[%c0_13, %c384] : memref<1x2048xf32, #tpu.memory_space<vmem>>, vector<1x128xf32>
    %28 = vector.broadcast %27 : vector<1x128xf32> to vector<16x128xf32>
    %29 = arith.addf %26, %28 : vector<16x128xf32>
    %cst_14 = arith.constant 0.000000e+00 : f32
    %30 = vector.broadcast %cst_14 : f32 to vector<16x128xf32>
    %31 = arith.maximumf %29, %30 : vector<16x128xf32>
    %32 = arith.truncf %31 : vector<16x128xf32> to vector<16x128xbf16>
    %33 = vector.extract_strided_slice %32 {offsets = [0, 0], sizes = [16, 16], strides = [1, 1]} : vector<16x128xbf16> to vector<16x16xbf16>
    %c0_15 = arith.constant 0 : index
    %c256_16 = arith.constant 256 : index
    %34 = vector.load %arg2[%c0_15, %c256_16] : memref<16x640xbf16, #tpu.memory_space<vmem>>, vector<16x128xbf16>
    %cst_17 = arith.constant dense<0.000000e+00> : vector<16x128xf32>
    %35 = tpu.matmul %33, %34, %cst_17 {dimension_numbers = #tpu.dot_dimension_numbers<[1], [0], [0], [1], [0, 0, 1, 1], [], []>} : vector<16x16xbf16>, vector<16x128xbf16>, vector<16x128xf32> -> vector<16x128xf32>
    %c0_18 = arith.constant 0 : index
    %c512 = arith.constant 512 : index
    %36 = vector.load %arg6[%c0_18, %c512] : memref<1x2048xf32, #tpu.memory_space<vmem>>, vector<1x128xf32>
    %37 = vector.broadcast %36 : vector<1x128xf32> to vector<16x128xf32>
    %38 = arith.addf %35, %37 : vector<16x128xf32>
    %39 = arith.addf %38, %22 : vector<16x128xf32>
    %cst_19 = arith.constant 0.000000e+00 : f32
    %40 = vector.broadcast %cst_19 : f32 to vector<16x128xf32>
    %41 = arith.maximumf %39, %40 : vector<16x128xf32>
    %42 = arith.truncf %41 : vector<16x128xf32> to vector<16x128xbf16>
    %43 = vector.extract_strided_slice %42 {offsets = [0, 0], sizes = [16, 16], strides = [1, 1]} : vector<16x128xbf16> to vector<16x16xbf16>
    %c0_20 = arith.constant 0 : index
    %c384_21 = arith.constant 384 : index
    %44 = vector.load %arg2[%c0_20, %c384_21] : memref<16x640xbf16, #tpu.memory_space<vmem>>, vector<16x256xbf16>
    %cst_22 = arith.constant dense<0.000000e+00> : vector<16x256xf32>
    %45 = tpu.matmul %43, %44, %cst_22 {dimension_numbers = #tpu.dot_dimension_numbers<[1], [0], [0], [1], [0, 0, 1, 1], [], []>} : vector<16x16xbf16>, vector<16x256xbf16>, vector<16x256xf32> -> vector<16x256xf32>
    %c0_23 = arith.constant 0 : index
    %c640 = arith.constant 640 : index
    %46 = vector.load %arg6[%c0_23, %c640] : memref<1x2048xf32, #tpu.memory_space<vmem>>, vector<1x256xf32>
    %47 = vector.broadcast %46 : vector<1x256xf32> to vector<16x256xf32>
    %48 = arith.addf %45, %47 : vector<16x256xf32>
    %49 = vector.extract_strided_slice %48 {offsets = [0, 0], sizes = [16, 128], strides = [1, 1]} : vector<16x256xf32> to vector<16x128xf32>
    %cst_24 = arith.constant 0.000000e+00 : f32
    %50 = vector.broadcast %cst_24 : f32 to vector<16x128xf32>
    %51 = arith.maximumf %49, %50 : vector<16x128xf32>
    %52 = vector.extract_strided_slice %48 {offsets = [0, 128], sizes = [16, 128], strides = [1, 1]} : vector<16x256xf32> to vector<16x128xf32>
    %53 = arith.truncf %51 : vector<16x128xf32> to vector<16x128xbf16>
    %54 = vector.extract_strided_slice %53 {offsets = [0, 0], sizes = [16, 32], strides = [1, 1]} : vector<16x128xbf16> to vector<16x32xbf16>
    %c0_25 = arith.constant 0 : index
    %c0_26 = arith.constant 0 : index
    %55 = vector.load %arg3[%c0_25, %c0_26] : memref<32x640xbf16, #tpu.memory_space<vmem>>, vector<32x128xbf16>
    %cst_27 = arith.constant dense<0.000000e+00> : vector<16x128xf32>
    %56 = tpu.matmul %54, %55, %cst_27 {dimension_numbers = #tpu.dot_dimension_numbers<[1], [0], [0], [1], [0, 0, 1, 1], [], []>} : vector<16x32xbf16>, vector<32x128xbf16>, vector<16x128xf32> -> vector<16x128xf32>
    %c0_28 = arith.constant 0 : index
    %c896 = arith.constant 896 : index
    %57 = vector.load %arg6[%c0_28, %c896] : memref<1x2048xf32, #tpu.memory_space<vmem>>, vector<1x128xf32>
    %58 = vector.broadcast %57 : vector<1x128xf32> to vector<16x128xf32>
    %59 = arith.addf %56, %58 : vector<16x128xf32>
    %60 = arith.addf %59, %52 : vector<16x128xf32>
    %cst_29 = arith.constant 0.000000e+00 : f32
    %61 = vector.broadcast %cst_29 : f32 to vector<16x128xf32>
    %62 = arith.maximumf %60, %61 : vector<16x128xf32>
    %63 = arith.truncf %62 : vector<16x128xf32> to vector<16x128xbf16>
    %64 = vector.extract_strided_slice %63 {offsets = [0, 0], sizes = [16, 32], strides = [1, 1]} : vector<16x128xbf16> to vector<16x32xbf16>
    %c0_30 = arith.constant 0 : index
    %c128_31 = arith.constant 128 : index
    %65 = vector.load %arg3[%c0_30, %c128_31] : memref<32x640xbf16, #tpu.memory_space<vmem>>, vector<32x128xbf16>
    %cst_32 = arith.constant dense<0.000000e+00> : vector<16x128xf32>
    %66 = tpu.matmul %64, %65, %cst_32 {dimension_numbers = #tpu.dot_dimension_numbers<[1], [0], [0], [1], [0, 0, 1, 1], [], []>} : vector<16x32xbf16>, vector<32x128xbf16>, vector<16x128xf32> -> vector<16x128xf32>
    %c0_33 = arith.constant 0 : index
    %c1024 = arith.constant 1024 : index
    %67 = vector.load %arg6[%c0_33, %c1024] : memref<1x2048xf32, #tpu.memory_space<vmem>>, vector<1x128xf32>
    %68 = vector.broadcast %67 : vector<1x128xf32> to vector<16x128xf32>
    %69 = arith.addf %66, %68 : vector<16x128xf32>
    %cst_34 = arith.constant 0.000000e+00 : f32
    %70 = vector.broadcast %cst_34 : f32 to vector<16x128xf32>
    %71 = arith.maximumf %69, %70 : vector<16x128xf32>
    %72 = arith.truncf %71 : vector<16x128xf32> to vector<16x128xbf16>
    %73 = vector.extract_strided_slice %72 {offsets = [0, 0], sizes = [16, 32], strides = [1, 1]} : vector<16x128xbf16> to vector<16x32xbf16>
    %c0_35 = arith.constant 0 : index
    %c256_36 = arith.constant 256 : index
    %74 = vector.load %arg3[%c0_35, %c256_36] : memref<32x640xbf16, #tpu.memory_space<vmem>>, vector<32x128xbf16>
    %cst_37 = arith.constant dense<0.000000e+00> : vector<16x128xf32>
    %75 = tpu.matmul %73, %74, %cst_37 {dimension_numbers = #tpu.dot_dimension_numbers<[1], [0], [0], [1], [0, 0, 1, 1], [], []>} : vector<16x32xbf16>, vector<32x128xbf16>, vector<16x128xf32> -> vector<16x128xf32>
    %c0_38 = arith.constant 0 : index
    %c1152 = arith.constant 1152 : index
    %76 = vector.load %arg6[%c0_38, %c1152] : memref<1x2048xf32, #tpu.memory_space<vmem>>, vector<1x128xf32>
    %77 = vector.broadcast %76 : vector<1x128xf32> to vector<16x128xf32>
    %78 = arith.addf %75, %77 : vector<16x128xf32>
    %79 = arith.addf %78, %62 : vector<16x128xf32>
    %cst_39 = arith.constant 0.000000e+00 : f32
    %80 = vector.broadcast %cst_39 : f32 to vector<16x128xf32>
    %81 = arith.maximumf %79, %80 : vector<16x128xf32>
    %82 = arith.truncf %81 : vector<16x128xf32> to vector<16x128xbf16>
    %83 = vector.extract_strided_slice %82 {offsets = [0, 0], sizes = [16, 32], strides = [1, 1]} : vector<16x128xbf16> to vector<16x32xbf16>
    %c0_40 = arith.constant 0 : index
    %c384_41 = arith.constant 384 : index
    %84 = vector.load %arg3[%c0_40, %c384_41] : memref<32x640xbf16, #tpu.memory_space<vmem>>, vector<32x256xbf16>
    %cst_42 = arith.constant dense<0.000000e+00> : vector<16x256xf32>
    %85 = tpu.matmul %83, %84, %cst_42 {dimension_numbers = #tpu.dot_dimension_numbers<[1], [0], [0], [1], [0, 0, 1, 1], [], []>} : vector<16x32xbf16>, vector<32x256xbf16>, vector<16x256xf32> -> vector<16x256xf32>
    %c0_43 = arith.constant 0 : index
    %c1280 = arith.constant 1280 : index
    %86 = vector.load %arg6[%c0_43, %c1280] : memref<1x2048xf32, #tpu.memory_space<vmem>>, vector<1x256xf32>
    %87 = vector.broadcast %86 : vector<1x256xf32> to vector<16x256xf32>
    %88 = arith.addf %85, %87 : vector<16x256xf32>
    %89 = vector.extract_strided_slice %88 {offsets = [0, 0], sizes = [16, 128], strides = [1, 1]} : vector<16x256xf32> to vector<16x128xf32>
    %cst_44 = arith.constant 0.000000e+00 : f32
    %90 = vector.broadcast %cst_44 : f32 to vector<16x128xf32>
    %91 = arith.maximumf %89, %90 : vector<16x128xf32>
    %92 = vector.extract_strided_slice %88 {offsets = [0, 128], sizes = [16, 128], strides = [1, 1]} : vector<16x256xf32> to vector<16x128xf32>
    %93 = arith.truncf %91 : vector<16x128xf32> to vector<16x128xbf16>
    %94 = vector.extract_strided_slice %93 {offsets = [0, 0], sizes = [16, 64], strides = [1, 1]} : vector<16x128xbf16> to vector<16x64xbf16>
    %c0_45 = arith.constant 0 : index
    %c0_46 = arith.constant 0 : index
    %95 = vector.load %arg4[%c0_45, %c0_46] : memref<64x512xbf16, #tpu.memory_space<vmem>>, vector<64x128xbf16>
    %cst_47 = arith.constant dense<0.000000e+00> : vector<16x128xf32>
    %96 = tpu.matmul %94, %95, %cst_47 {dimension_numbers = #tpu.dot_dimension_numbers<[1], [0], [0], [1], [0, 0, 1, 1], [], []>} : vector<16x64xbf16>, vector<64x128xbf16>, vector<16x128xf32> -> vector<16x128xf32>
    %c0_48 = arith.constant 0 : index
    %c1536 = arith.constant 1536 : index
    %97 = vector.load %arg6[%c0_48, %c1536] : memref<1x2048xf32, #tpu.memory_space<vmem>>, vector<1x128xf32>
    %98 = vector.broadcast %97 : vector<1x128xf32> to vector<16x128xf32>
    %99 = arith.addf %96, %98 : vector<16x128xf32>
    %100 = arith.addf %99, %92 : vector<16x128xf32>
    %cst_49 = arith.constant 0.000000e+00 : f32
    %101 = vector.broadcast %cst_49 : f32 to vector<16x128xf32>
    %102 = arith.maximumf %100, %101 : vector<16x128xf32>
    %103 = arith.truncf %102 : vector<16x128xf32> to vector<16x128xbf16>
    %104 = vector.extract_strided_slice %103 {offsets = [0, 0], sizes = [16, 64], strides = [1, 1]} : vector<16x128xbf16> to vector<16x64xbf16>
    %c0_50 = arith.constant 0 : index
    %c128_51 = arith.constant 128 : index
    %105 = vector.load %arg4[%c0_50, %c128_51] : memref<64x512xbf16, #tpu.memory_space<vmem>>, vector<64x128xbf16>
    %cst_52 = arith.constant dense<0.000000e+00> : vector<16x128xf32>
    %106 = tpu.matmul %104, %105, %cst_52 {dimension_numbers = #tpu.dot_dimension_numbers<[1], [0], [0], [1], [0, 0, 1, 1], [], []>} : vector<16x64xbf16>, vector<64x128xbf16>, vector<16x128xf32> -> vector<16x128xf32>
    %c0_53 = arith.constant 0 : index
    %c1664 = arith.constant 1664 : index
    %107 = vector.load %arg6[%c0_53, %c1664] : memref<1x2048xf32, #tpu.memory_space<vmem>>, vector<1x128xf32>
    %108 = vector.broadcast %107 : vector<1x128xf32> to vector<16x128xf32>
    %109 = arith.addf %106, %108 : vector<16x128xf32>
    %cst_54 = arith.constant 0.000000e+00 : f32
    %110 = vector.broadcast %cst_54 : f32 to vector<16x128xf32>
    %111 = arith.maximumf %109, %110 : vector<16x128xf32>
    %112 = arith.truncf %111 : vector<16x128xf32> to vector<16x128xbf16>
    %113 = vector.extract_strided_slice %112 {offsets = [0, 0], sizes = [16, 64], strides = [1, 1]} : vector<16x128xbf16> to vector<16x64xbf16>
    %c0_55 = arith.constant 0 : index
    %c256_56 = arith.constant 256 : index
    %114 = vector.load %arg4[%c0_55, %c256_56] : memref<64x512xbf16, #tpu.memory_space<vmem>>, vector<64x128xbf16>
    %cst_57 = arith.constant dense<0.000000e+00> : vector<16x128xf32>
    %115 = tpu.matmul %113, %114, %cst_57 {dimension_numbers = #tpu.dot_dimension_numbers<[1], [0], [0], [1], [0, 0, 1, 1], [], []>} : vector<16x64xbf16>, vector<64x128xbf16>, vector<16x128xf32> -> vector<16x128xf32>
    %c0_58 = arith.constant 0 : index
    %c1792 = arith.constant 1792 : index
    %116 = vector.load %arg6[%c0_58, %c1792] : memref<1x2048xf32, #tpu.memory_space<vmem>>, vector<1x128xf32>
    %117 = vector.broadcast %116 : vector<1x128xf32> to vector<16x128xf32>
    %118 = arith.addf %115, %117 : vector<16x128xf32>
    %119 = arith.addf %118, %102 : vector<16x128xf32>
    %cst_59 = arith.constant 0.000000e+00 : f32
    %120 = vector.broadcast %cst_59 : f32 to vector<16x128xf32>
    %121 = arith.maximumf %119, %120 : vector<16x128xf32>
    %c0_60 = arith.constant 0 : index
    %c0_61 = arith.constant 0 : index
    %122 = vector.load %arg8[%c0_60, %c0_61] : memref<32x128xf32, #tpu.memory_space<vmem>>, vector<16x128xf32>
    tpu.vector_store %arg8[%c0_60, %c0_61], %121 {strides = array<i32>} : memref<32x128xf32, #tpu.memory_space<vmem>>, vector<16x128xf32>,
    %123 = arith.truncf %121 : vector<16x128xf32> to vector<16x128xbf16>
    %124 = vector.extract_strided_slice %123 {offsets = [0, 0], sizes = [16, 64], strides = [1, 1]} : vector<16x128xbf16> to vector<16x64xbf16>
    %c0_62 = arith.constant 0 : index
    %c384_63 = arith.constant 384 : index
    %125 = vector.load %arg4[%c0_62, %c384_63] : memref<64x512xbf16, #tpu.memory_space<vmem>>, vector<64x128xbf16>
    %cst_64 = arith.constant dense<0.000000e+00> : vector<16x128xf32>
    %126 = tpu.matmul %124, %125, %cst_64 {dimension_numbers = #tpu.dot_dimension_numbers<[1], [0], [0], [1], [0, 0, 1, 1], [], []>} : vector<16x64xbf16>, vector<64x128xbf16>, vector<16x128xf32> -> vector<16x128xf32>
    %c0_65 = arith.constant 0 : index
    %c1920 = arith.constant 1920 : index
    %127 = vector.load %arg6[%c0_65, %c1920] : memref<1x2048xf32, #tpu.memory_space<vmem>>, vector<1x128xf32>
    %128 = vector.broadcast %127 : vector<1x128xf32> to vector<16x128xf32>
    %129 = arith.addf %126, %128 : vector<16x128xf32>
    %c0_66 = arith.constant 0 : index
    %c0_67 = arith.constant 0 : index
    %130 = vector.load %arg7[%c0_66, %c0_67] : memref<32x128xf32, #tpu.memory_space<vmem>>, vector<16x128xf32>
    tpu.vector_store %arg7[%c0_66, %c0_67], %129 {strides = array<i32>} : memref<32x128xf32, #tpu.memory_space<vmem>>, vector<16x128xf32>,
    %131 = arith.truncf %2 : vector<16x128xf32> to vector<16x128xbf16>
    %c0_68 = arith.constant 0 : index
    %c0_69 = arith.constant 0 : index
    %132 = vector.load %arg5[%c0_68, %c0_69] : memref<128x256xbf16, #tpu.memory_space<vmem>>, vector<128x256xbf16>
    %cst_70 = arith.constant dense<0.000000e+00> : vector<16x256xf32>
    %133 = tpu.matmul %131, %132, %cst_70 {dimension_numbers = #tpu.dot_dimension_numbers<[1], [0], [0], [1], [0, 0, 1, 1], [], []>} : vector<16x128xbf16>, vector<128x256xbf16>, vector<16x256xf32> -> vector<16x256xf32>
    %c0_71 = arith.constant 0 : index
    %c0_72 = arith.constant 0 : index
    %134 = vector.load %arg6[%c0_71, %c0_72] : memref<1x2048xf32, #tpu.memory_space<vmem>>, vector<1x256xf32>
    %135 = vector.broadcast %134 : vector<1x256xf32> to vector<16x256xf32>
    %136 = arith.addf %133, %135 : vector<16x256xf32>
    %137 = vector.extract_strided_slice %136 {offsets = [0, 0], sizes = [16, 128], strides = [1, 1]} : vector<16x256xf32> to vector<16x128xf32>
    %cst_73 = arith.constant 0.000000e+00 : f32
    %138 = vector.broadcast %cst_73 : f32 to vector<16x128xf32>
    %139 = arith.maximumf %137, %138 : vector<16x128xf32>
    %140 = vector.extract_strided_slice %136 {offsets = [0, 128], sizes = [16, 128], strides = [1, 1]} : vector<16x256xf32> to vector<16x128xf32>
    %141 = arith.truncf %139 : vector<16x128xf32> to vector<16x128xbf16>
    %142 = vector.extract_strided_slice %141 {offsets = [0, 0], sizes = [16, 16], strides = [1, 1]} : vector<16x128xbf16> to vector<16x16xbf16>
    %c0_74 = arith.constant 0 : index
    %c0_75 = arith.constant 0 : index
    %143 = vector.load %arg2[%c0_74, %c0_75] : memref<16x640xbf16, #tpu.memory_space<vmem>>, vector<16x128xbf16>
    %cst_76 = arith.constant dense<0.000000e+00> : vector<16x128xf32>
    %144 = tpu.matmul %142, %143, %cst_76 {dimension_numbers = #tpu.dot_dimension_numbers<[1], [0], [0], [1], [0, 0, 1, 1], [], []>} : vector<16x16xbf16>, vector<16x128xbf16>, vector<16x128xf32> -> vector<16x128xf32>
    %c0_77 = arith.constant 0 : index
    %c256_78 = arith.constant 256 : index
    %145 = vector.load %arg6[%c0_77, %c256_78] : memref<1x2048xf32, #tpu.memory_space<vmem>>, vector<1x128xf32>
    %146 = vector.broadcast %145 : vector<1x128xf32> to vector<16x128xf32>
    %147 = arith.addf %144, %146 : vector<16x128xf32>
    %148 = arith.addf %147, %140 : vector<16x128xf32>
    %cst_79 = arith.constant 0.000000e+00 : f32
    %149 = vector.broadcast %cst_79 : f32 to vector<16x128xf32>
    %150 = arith.maximumf %148, %149 : vector<16x128xf32>
    %151 = arith.truncf %150 : vector<16x128xf32> to vector<16x128xbf16>
    %152 = vector.extract_strided_slice %151 {offsets = [0, 0], sizes = [16, 16], strides = [1, 1]} : vector<16x128xbf16> to vector<16x16xbf16>
    %c0_80 = arith.constant 0 : index
    %c128_81 = arith.constant 128 : index
    %153 = vector.load %arg2[%c0_80, %c128_81] : memref<16x640xbf16, #tpu.memory_space<vmem>>, vector<16x128xbf16>
    %cst_82 = arith.constant dense<0.000000e+00> : vector<16x128xf32>
    %154 = tpu.matmul %152, %153, %cst_82 {dimension_numbers = #tpu.dot_dimension_numbers<[1], [0], [0], [1], [0, 0, 1, 1], [], []>} : vector<16x16xbf16>, vector<16x128xbf16>, vector<16x128xf32> -> vector<16x128xf32>
    %c0_83 = arith.constant 0 : index
    %c384_84 = arith.constant 384 : index
    %155 = vector.load %arg6[%c0_83, %c384_84] : memref<1x2048xf32, #tpu.memory_space<vmem>>, vector<1x128xf32>
    %156 = vector.broadcast %155 : vector<1x128xf32> to vector<16x128xf32>
    %157 = arith.addf %154, %156 : vector<16x128xf32>
    %cst_85 = arith.constant 0.000000e+00 : f32
    %158 = vector.broadcast %cst_85 : f32 to vector<16x128xf32>
    %159 = arith.maximumf %157, %158 : vector<16x128xf32>
    %160 = arith.truncf %159 : vector<16x128xf32> to vector<16x128xbf16>
    %161 = vector.extract_strided_slice %160 {offsets = [0, 0], sizes = [16, 16], strides = [1, 1]} : vector<16x128xbf16> to vector<16x16xbf16>
    %c0_86 = arith.constant 0 : index
    %c256_87 = arith.constant 256 : index
    %162 = vector.load %arg2[%c0_86, %c256_87] : memref<16x640xbf16, #tpu.memory_space<vmem>>, vector<16x128xbf16>
    %cst_88 = arith.constant dense<0.000000e+00> : vector<16x128xf32>
    %163 = tpu.matmul %161, %162, %cst_88 {dimension_numbers = #tpu.dot_dimension_numbers<[1], [0], [0], [1], [0, 0, 1, 1], [], []>} : vector<16x16xbf16>, vector<16x128xbf16>, vector<16x128xf32> -> vector<16x128xf32>
    %c0_89 = arith.constant 0 : index
    %c512_90 = arith.constant 512 : index
    %164 = vector.load %arg6[%c0_89, %c512_90] : memref<1x2048xf32, #tpu.memory_space<vmem>>, vector<1x128xf32>
    %165 = vector.broadcast %164 : vector<1x128xf32> to vector<16x128xf32>
    %166 = arith.addf %163, %165 : vector<16x128xf32>
    %167 = arith.addf %166, %150 : vector<16x128xf32>
    %cst_91 = arith.constant 0.000000e+00 : f32
    %168 = vector.broadcast %cst_91 : f32 to vector<16x128xf32>
    %169 = arith.maximumf %167, %168 : vector<16x128xf32>
    %170 = arith.truncf %169 : vector<16x128xf32> to vector<16x128xbf16>
    %171 = vector.extract_strided_slice %170 {offsets = [0, 0], sizes = [16, 16], strides = [1, 1]} : vector<16x128xbf16> to vector<16x16xbf16>
    %c0_92 = arith.constant 0 : index
    %c384_93 = arith.constant 384 : index
    %172 = vector.load %arg2[%c0_92, %c384_93] : memref<16x640xbf16, #tpu.memory_space<vmem>>, vector<16x256xbf16>
    %cst_94 = arith.constant dense<0.000000e+00> : vector<16x256xf32>
    %173 = tpu.matmul %171, %172, %cst_94 {dimension_numbers = #tpu.dot_dimension_numbers<[1], [0], [0], [1], [0, 0, 1, 1], [], []>} : vector<16x16xbf16>, vector<16x256xbf16>, vector<16x256xf32> -> vector<16x256xf32>
    %c0_95 = arith.constant 0 : index
    %c640_96 = arith.constant 640 : index
    %174 = vector.load %arg6[%c0_95, %c640_96] : memref<1x2048xf32, #tpu.memory_space<vmem>>, vector<1x256xf32>
    %175 = vector.broadcast %174 : vector<1x256xf32> to vector<16x256xf32>
    %176 = arith.addf %173, %175 : vector<16x256xf32>
    %177 = vector.extract_strided_slice %176 {offsets = [0, 0], sizes = [16, 128], strides = [1, 1]} : vector<16x256xf32> to vector<16x128xf32>
    %cst_97 = arith.constant 0.000000e+00 : f32
    %178 = vector.broadcast %cst_97 : f32 to vector<16x128xf32>
    %179 = arith.maximumf %177, %178 : vector<16x128xf32>
    %180 = vector.extract_strided_slice %176 {offsets = [0, 128], sizes = [16, 128], strides = [1, 1]} : vector<16x256xf32> to vector<16x128xf32>
    %181 = arith.truncf %179 : vector<16x128xf32> to vector<16x128xbf16>
    %182 = vector.extract_strided_slice %181 {offsets = [0, 0], sizes = [16, 32], strides = [1, 1]} : vector<16x128xbf16> to vector<16x32xbf16>
    %c0_98 = arith.constant 0 : index
    %c0_99 = arith.constant 0 : index
    %183 = vector.load %arg3[%c0_98, %c0_99] : memref<32x640xbf16, #tpu.memory_space<vmem>>, vector<32x128xbf16>
    %cst_100 = arith.constant dense<0.000000e+00> : vector<16x128xf32>
    %184 = tpu.matmul %182, %183, %cst_100 {dimension_numbers = #tpu.dot_dimension_numbers<[1], [0], [0], [1], [0, 0, 1, 1], [], []>} : vector<16x32xbf16>, vector<32x128xbf16>, vector<16x128xf32> -> vector<16x128xf32>
    %c0_101 = arith.constant 0 : index
    %c896_102 = arith.constant 896 : index
    %185 = vector.load %arg6[%c0_101, %c896_102] : memref<1x2048xf32, #tpu.memory_space<vmem>>, vector<1x128xf32>
    %186 = vector.broadcast %185 : vector<1x128xf32> to vector<16x128xf32>
    %187 = arith.addf %184, %186 : vector<16x128xf32>
    %188 = arith.addf %187, %180 : vector<16x128xf32>
    %cst_103 = arith.constant 0.000000e+00 : f32
    %189 = vector.broadcast %cst_103 : f32 to vector<16x128xf32>
    %190 = arith.maximumf %188, %189 : vector<16x128xf32>
    %191 = arith.truncf %190 : vector<16x128xf32> to vector<16x128xbf16>
    %192 = vector.extract_strided_slice %191 {offsets = [0, 0], sizes = [16, 32], strides = [1, 1]} : vector<16x128xbf16> to vector<16x32xbf16>
    %c0_104 = arith.constant 0 : index
    %c128_105 = arith.constant 128 : index
    %193 = vector.load %arg3[%c0_104, %c128_105] : memref<32x640xbf16, #tpu.memory_space<vmem>>, vector<32x128xbf16>
    %cst_106 = arith.constant dense<0.000000e+00> : vector<16x128xf32>
    %194 = tpu.matmul %192, %193, %cst_106 {dimension_numbers = #tpu.dot_dimension_numbers<[1], [0], [0], [1], [0, 0, 1, 1], [], []>} : vector<16x32xbf16>, vector<32x128xbf16>, vector<16x128xf32> -> vector<16x128xf32>
    %c0_107 = arith.constant 0 : index
    %c1024_108 = arith.constant 1024 : index
    %195 = vector.load %arg6[%c0_107, %c1024_108] : memref<1x2048xf32, #tpu.memory_space<vmem>>, vector<1x128xf32>
    %196 = vector.broadcast %195 : vector<1x128xf32> to vector<16x128xf32>
    %197 = arith.addf %194, %196 : vector<16x128xf32>
    %cst_109 = arith.constant 0.000000e+00 : f32
    %198 = vector.broadcast %cst_109 : f32 to vector<16x128xf32>
    %199 = arith.maximumf %197, %198 : vector<16x128xf32>
    %200 = arith.truncf %199 : vector<16x128xf32> to vector<16x128xbf16>
    %201 = vector.extract_strided_slice %200 {offsets = [0, 0], sizes = [16, 32], strides = [1, 1]} : vector<16x128xbf16> to vector<16x32xbf16>
    %c0_110 = arith.constant 0 : index
    %c256_111 = arith.constant 256 : index
    %202 = vector.load %arg3[%c0_110, %c256_111] : memref<32x640xbf16, #tpu.memory_space<vmem>>, vector<32x128xbf16>
    %cst_112 = arith.constant dense<0.000000e+00> : vector<16x128xf32>
    %203 = tpu.matmul %201, %202, %cst_112 {dimension_numbers = #tpu.dot_dimension_numbers<[1], [0], [0], [1], [0, 0, 1, 1], [], []>} : vector<16x32xbf16>, vector<32x128xbf16>, vector<16x128xf32> -> vector<16x128xf32>
    %c0_113 = arith.constant 0 : index
    %c1152_114 = arith.constant 1152 : index
    %204 = vector.load %arg6[%c0_113, %c1152_114] : memref<1x2048xf32, #tpu.memory_space<vmem>>, vector<1x128xf32>
    %205 = vector.broadcast %204 : vector<1x128xf32> to vector<16x128xf32>
    %206 = arith.addf %203, %205 : vector<16x128xf32>
    %207 = arith.addf %206, %190 : vector<16x128xf32>
    %cst_115 = arith.constant 0.000000e+00 : f32
    %208 = vector.broadcast %cst_115 : f32 to vector<16x128xf32>
    %209 = arith.maximumf %207, %208 : vector<16x128xf32>
    %210 = arith.truncf %209 : vector<16x128xf32> to vector<16x128xbf16>
    %211 = vector.extract_strided_slice %210 {offsets = [0, 0], sizes = [16, 32], strides = [1, 1]} : vector<16x128xbf16> to vector<16x32xbf16>
    %c0_116 = arith.constant 0 : index
    %c384_117 = arith.constant 384 : index
    %212 = vector.load %arg3[%c0_116, %c384_117] : memref<32x640xbf16, #tpu.memory_space<vmem>>, vector<32x256xbf16>
    %cst_118 = arith.constant dense<0.000000e+00> : vector<16x256xf32>
    %213 = tpu.matmul %211, %212, %cst_118 {dimension_numbers = #tpu.dot_dimension_numbers<[1], [0], [0], [1], [0, 0, 1, 1], [], []>} : vector<16x32xbf16>, vector<32x256xbf16>, vector<16x256xf32> -> vector<16x256xf32>
    %c0_119 = arith.constant 0 : index
    %c1280_120 = arith.constant 1280 : index
    %214 = vector.load %arg6[%c0_119, %c1280_120] : memref<1x2048xf32, #tpu.memory_space<vmem>>, vector<1x256xf32>
    %215 = vector.broadcast %214 : vector<1x256xf32> to vector<16x256xf32>
    %216 = arith.addf %213, %215 : vector<16x256xf32>
    %217 = vector.extract_strided_slice %216 {offsets = [0, 0], sizes = [16, 128], strides = [1, 1]} : vector<16x256xf32> to vector<16x128xf32>
    %cst_121 = arith.constant 0.000000e+00 : f32
    %218 = vector.broadcast %cst_121 : f32 to vector<16x128xf32>
    %219 = arith.maximumf %217, %218 : vector<16x128xf32>
    %220 = vector.extract_strided_slice %216 {offsets = [0, 128], sizes = [16, 128], strides = [1, 1]} : vector<16x256xf32> to vector<16x128xf32>
    %221 = arith.truncf %219 : vector<16x128xf32> to vector<16x128xbf16>
    %222 = vector.extract_strided_slice %221 {offsets = [0, 0], sizes = [16, 64], strides = [1, 1]} : vector<16x128xbf16> to vector<16x64xbf16>
    %c0_122 = arith.constant 0 : index
    %c0_123 = arith.constant 0 : index
    %223 = vector.load %arg4[%c0_122, %c0_123] : memref<64x512xbf16, #tpu.memory_space<vmem>>, vector<64x128xbf16>
    %cst_124 = arith.constant dense<0.000000e+00> : vector<16x128xf32>
    %224 = tpu.matmul %222, %223, %cst_124 {dimension_numbers = #tpu.dot_dimension_numbers<[1], [0], [0], [1], [0, 0, 1, 1], [], []>} : vector<16x64xbf16>, vector<64x128xbf16>, vector<16x128xf32> -> vector<16x128xf32>
    %c0_125 = arith.constant 0 : index
    %c1536_126 = arith.constant 1536 : index
    %225 = vector.load %arg6[%c0_125, %c1536_126] : memref<1x2048xf32, #tpu.memory_space<vmem>>, vector<1x128xf32>
    %226 = vector.broadcast %225 : vector<1x128xf32> to vector<16x128xf32>
    %227 = arith.addf %224, %226 : vector<16x128xf32>
    %228 = arith.addf %227, %220 : vector<16x128xf32>
    %cst_127 = arith.constant 0.000000e+00 : f32
    %229 = vector.broadcast %cst_127 : f32 to vector<16x128xf32>
    %230 = arith.maximumf %228, %229 : vector<16x128xf32>
    %231 = arith.truncf %230 : vector<16x128xf32> to vector<16x128xbf16>
    %232 = vector.extract_strided_slice %231 {offsets = [0, 0], sizes = [16, 64], strides = [1, 1]} : vector<16x128xbf16> to vector<16x64xbf16>
    %c0_128 = arith.constant 0 : index
    %c128_129 = arith.constant 128 : index
    %233 = vector.load %arg4[%c0_128, %c128_129] : memref<64x512xbf16, #tpu.memory_space<vmem>>, vector<64x128xbf16>
    %cst_130 = arith.constant dense<0.000000e+00> : vector<16x128xf32>
    %234 = tpu.matmul %232, %233, %cst_130 {dimension_numbers = #tpu.dot_dimension_numbers<[1], [0], [0], [1], [0, 0, 1, 1], [], []>} : vector<16x64xbf16>, vector<64x128xbf16>, vector<16x128xf32> -> vector<16x128xf32>
    %c0_131 = arith.constant 0 : index
    %c1664_132 = arith.constant 1664 : index
    %235 = vector.load %arg6[%c0_131, %c1664_132] : memref<1x2048xf32, #tpu.memory_space<vmem>>, vector<1x128xf32>
    %236 = vector.broadcast %235 : vector<1x128xf32> to vector<16x128xf32>
    %237 = arith.addf %234, %236 : vector<16x128xf32>
    %cst_133 = arith.constant 0.000000e+00 : f32
    %238 = vector.broadcast %cst_133 : f32 to vector<16x128xf32>
    %239 = arith.maximumf %237, %238 : vector<16x128xf32>
    %240 = arith.truncf %239 : vector<16x128xf32> to vector<16x128xbf16>
    %241 = vector.extract_strided_slice %240 {offsets = [0, 0], sizes = [16, 64], strides = [1, 1]} : vector<16x128xbf16> to vector<16x64xbf16>
    %c0_134 = arith.constant 0 : index
    %c256_135 = arith.constant 256 : index
    %242 = vector.load %arg4[%c0_134, %c256_135] : memref<64x512xbf16, #tpu.memory_space<vmem>>, vector<64x128xbf16>
    %cst_136 = arith.constant dense<0.000000e+00> : vector<16x128xf32>
    %243 = tpu.matmul %241, %242, %cst_136 {dimension_numbers = #tpu.dot_dimension_numbers<[1], [0], [0], [1], [0, 0, 1, 1], [], []>} : vector<16x64xbf16>, vector<64x128xbf16>, vector<16x128xf32> -> vector<16x128xf32>
    %c0_137 = arith.constant 0 : index
    %c1792_138 = arith.constant 1792 : index
    %244 = vector.load %arg6[%c0_137, %c1792_138] : memref<1x2048xf32, #tpu.memory_space<vmem>>, vector<1x128xf32>
    %245 = vector.broadcast %244 : vector<1x128xf32> to vector<16x128xf32>
    %246 = arith.addf %243, %245 : vector<16x128xf32>
    %247 = arith.addf %246, %230 : vector<16x128xf32>
    %cst_139 = arith.constant 0.000000e+00 : f32
    %248 = vector.broadcast %cst_139 : f32 to vector<16x128xf32>
    %249 = arith.maximumf %247, %248 : vector<16x128xf32>
    %c16 = arith.constant 16 : index
    %c0_140 = arith.constant 0 : index
    %250 = vector.load %arg8[%c16, %c0_140] : memref<32x128xf32, #tpu.memory_space<vmem>>, vector<16x128xf32>
    tpu.vector_store %arg8[%c16, %c0_140], %249 {strides = array<i32>} : memref<32x128xf32, #tpu.memory_space<vmem>>, vector<16x128xf32>,
    %251 = arith.truncf %249 : vector<16x128xf32> to vector<16x128xbf16>
    %252 = vector.extract_strided_slice %251 {offsets = [0, 0], sizes = [16, 64], strides = [1, 1]} : vector<16x128xbf16> to vector<16x64xbf16>
    %c0_141 = arith.constant 0 : index
    %c384_142 = arith.constant 384 : index
    %253 = vector.load %arg4[%c0_141, %c384_142] : memref<64x512xbf16, #tpu.memory_space<vmem>>, vector<64x128xbf16>
    %cst_143 = arith.constant dense<0.000000e+00> : vector<16x128xf32>
    %254 = tpu.matmul %252, %253, %cst_143 {dimension_numbers = #tpu.dot_dimension_numbers<[1], [0], [0], [1], [0, 0, 1, 1], [], []>} : vector<16x64xbf16>, vector<64x128xbf16>, vector<16x128xf32> -> vector<16x128xf32>
    %c0_144 = arith.constant 0 : index
    %c1920_145 = arith.constant 1920 : index
    %255 = vector.load %arg6[%c0_144, %c1920_145] : memref<1x2048xf32, #tpu.memory_space<vmem>>, vector<1x128xf32>
    %256 = vector.broadcast %255 : vector<1x128xf32> to vector<16x128xf32>
    %257 = arith.addf %254, %256 : vector<16x128xf32>
    %c16_146 = arith.constant 16 : index
    %c0_147 = arith.constant 0 : index
    %258 = vector.load %arg7[%c16_146, %c0_147] : memref<32x128xf32, #tpu.memory_space<vmem>>, vector<16x128xf32>
    tpu.vector_store %arg7[%c16_146, %c0_147], %257 {strides = array<i32>} : memref<32x128xf32, #tpu.memory_space<vmem>>, vector<16x128xf32>,
    return
  }
  func.func @transform_0(%arg0: i32) -> (i32, i32) {
    %c0_i32 = arith.constant 0 : i32
    %c0_i32_0 = arith.constant 0 : i32
    return %arg0, %c0_i32 : i32, i32
  }
  func.func @transform_1(%arg0: i32) -> (i32, i32) {
    %c0_i32 = arith.constant 0 : i32
    %c0_i32_0 = arith.constant 0 : i32
    %c0_i32_1 = arith.constant 0 : i32
    return %c0_i32, %c0_i32_0 : i32, i32
  }
  func.func @transform_2(%arg0: i32) -> (i32, i32) {
    %c0_i32 = arith.constant 0 : i32
    %c0_i32_0 = arith.constant 0 : i32
    %c0_i32_1 = arith.constant 0 : i32
    return %c0_i32, %c0_i32_0 : i32, i32
  }
  func.func @transform_3(%arg0: i32) -> (i32, i32) {
    %c0_i32 = arith.constant 0 : i32
    %c0_i32_0 = arith.constant 0 : i32
    %c0_i32_1 = arith.constant 0 : i32
    return %c0_i32, %c0_i32_0 : i32, i32
  }
  func.func @transform_4(%arg0: i32) -> (i32, i32) {
    %c0_i32 = arith.constant 0 : i32
    %c0_i32_0 = arith.constant 0 : i32
    %c0_i32_1 = arith.constant 0 : i32
    return %c0_i32, %c0_i32_0 : i32, i32
  }
  func.func @transform_5(%arg0: i32) -> (i32, i32) {
    %c0_i32 = arith.constant 0 : i32
    %c0_i32_0 = arith.constant 0 : i32
    %c0_i32_1 = arith.constant 0 : i32
    return %c0_i32, %c0_i32_0 : i32, i32
  }
  func.func @transform_6(%arg0: i32) -> (i32, i32) {
    %c0_i32 = arith.constant 0 : i32
    %c0_i32_0 = arith.constant 0 : i32
    return %arg0, %c0_i32 : i32, i32
  }
  func.func @transform_7(%arg0: i32) -> (i32, i32) {
    %c0_i32 = arith.constant 0 : i32
    %c0_i32_0 = arith.constant 0 : i32
    return %arg0, %c0_i32 : i32, i32
  }
}

</mosaic_0001>

<llo_original>
// kernel: tpu_custom_call.1
$region0: #{tpu_custom_call.1}
  #allocation0 [shape = 'u32[]', space=smem, size = 0x4, offset = 0x4, fixed_abs, tag = 'smem constant byte address 0x4 - core index']
  #allocation1 [shape = 'u32[144,128]{1,0:T(1,128)}', space=vmem, size = 0x12000, scoped, tag = 'internal scratch']
  %s0 = inlined_call_operand.hbm [shape: f32[32,128], index: 0, kind: input, shape index: {}]
  %s1 = inlined_call_operand.hbm [shape: bf16[16,640], index: 1, kind: input, shape index: {}]
  %s2 = inlined_call_operand.hbm [shape: bf16[32,640], index: 2, kind: input, shape index: {}]
  %s3 = inlined_call_operand.hbm [shape: bf16[64,512], index: 3, kind: input, shape index: {}]
  %s4 = inlined_call_operand.hbm [shape: bf16[128,256], index: 4, kind: input, shape index: {}]
  %s5 = inlined_call_operand.hbm [shape: f32[1,2048], index: 5, kind: input, shape index: {}]
  %s6 = inlined_call_operand.hbm [shape: f32[32,128], index: 6, kind: output, shape index: {0}]
  %s7 = inlined_call_operand.hbm [shape: f32[32,128], index: 7, kind: output, shape index: {1}]
  %8 = xla_tuple %s6, %s7
  %s9 = sld [smem:[#allocation0]]
  $region66: #{tpu_custom_call.1} parent=0
    _
  %s11 = ssub.s32 1, %s9
  %s12 = scalar_select 0, %s11, %s9
  $region1: #{tpu_custom_call.1} parent=0
    #allocation2 [shape = 'u8[16384]{0}', space=vmem, size = 0x4000, scoped, tag = 'input window, operand 0, single buffered']
    #allocation3 [shape = 's32[1]{0}', space=sflag, size = 0x4, scoped, tag = 'scoped memory for tpu_custom_call.1']
    #allocation4 [shape = 's32[1]{0}', space=sflag, size = 0x4, scoped, tag = 'scoped memory for tpu_custom_call.1']
    #allocation5 [shape = 'u8[20480]{0}', space=vmem, size = 0x5000, scoped, tag = 'input window, operand 1, single buffered']
    #allocation6 [shape = 's32[1]{0}', space=sflag, size = 0x4, scoped, tag = 'scoped memory for tpu_custom_call.1']
    #allocation7 [shape = 'u8[40960]{0}', space=vmem, size = 0xa000, scoped, tag = 'input window, operand 2, single buffered']
    #allocation8 [shape = 'u8[65536]{0}', space=vmem, size = 0x10000, scoped, tag = 'input window, operand 3, single buffered']
    #allocation9 [shape = 's32[1]{0}', space=sflag, size = 0x4, scoped, tag = 'scoped memory for tpu_custom_call.1']
    #allocation10 [shape = 'u8[65536]{0}', space=vmem, size = 0x10000, scoped, tag = 'input window, operand 4, single buffered']
    #allocation11 [shape = 'u8[8192]{0}', space=vmem, size = 0x2000, scoped, tag = 'input window, operand 5, single buffered']
    #allocation12 [shape = 's32[1]{0}', space=sflag, size = 0x4, scoped, tag = 'scoped memory for tpu_custom_call.1']
    #allocation13 [shape = 'u8[16384]{0}', space=vmem, size = 0x4000, scoped, tag = 'output window, operand 0, single buffered']
    #allocation14 [shape = 'u8[16384]{0}', space=vmem, size = 0x4000, scoped, tag = 'output window, operand 1, single buffered']
    #allocation15 [shape = 's32[1]{0}', space=sflag, size = 0x4, scoped, tag = 'scoped memory for tpu_custom_call.1']
    %13 = vsyncpa [#allocation3], 0
    %14 = vsyncpa [#allocation6], 0
    %15 = vsyncpa [#allocation9], 0
    %16 = vsyncpa [#allocation12], 0
    %17 = vsyncpa [#allocation4], 0
    %18 = vsyncpa [#allocation15], 0
    // Predicated region
    $region2: #{tpu_custom_call.1} parent=1 // pred_check
      _
    $region3: #{tpu_custom_call.1} parent=1 // pred_check_branch
      %20 = sbr.rel (0) target = $region5
    $region4: #{tpu_custom_call.1} parent=1 // pred_region
      %s22 = ssub.s32 512, 512
      %23 = vsyncadd [#allocation3], %s22
      %s24 = sshll.u32 [#allocation2], 4
      %s25 = int_to_ptr.vmem [resolvable:$true] %s24
      %30 = dma.hbm_to_vmem [thread:$0]  %s0, 512, %s25, [#allocation3], 128, 128, 8
    $region5: #{tpu_custom_call.1} parent=1 // pred_fallthru
      _
    // Predicated region
    $region6: #{tpu_custom_call.1} parent=1 // pred_check
      _
    $region7: #{tpu_custom_call.1} parent=1 // pred_check_branch
      %32 = sbr.rel (0) target = $region9
    $region8: #{tpu_custom_call.1} parent=1 // pred_region
      %s34 = ssub.s32 640, 640
      %35 = vsyncadd [#allocation6], %s34
      %s36 = sshll.u32 [#allocation5], 4
      %s37 = int_to_ptr.vmem [resolvable:$true] %s36
      %42 = dma.hbm_to_vmem [thread:$0]  %s1, 640, %s37, [#allocation6], 320, 320, 20
    $region9: #{tpu_custom_call.1} parent=1 // pred_fallthru
      _
    // Predicated region
    $region10: #{tpu_custom_call.1} parent=1 // pred_check
      _
    $region11: #{tpu_custom_call.1} parent=1 // pred_check_branch
      %44 = sbr.rel (0) target = $region13
    $region12: #{tpu_custom_call.1} parent=1 // pred_region
      %s46 = ssub.s32 1280, 1280
      %47 = vsyncadd [#allocation6], %s46
      %s48 = sshll.u32 [#allocation7], 4
      %s49 = int_to_ptr.vmem [resolvable:$true] %s48
      %54 = dma.hbm_to_vmem [thread:$0]  %s2, 1280, %s49, [#allocation6], 320, 320, 20
    $region13: #{tpu_custom_call.1} parent=1 // pred_fallthru
      _
    // Predicated region
    $region14: #{tpu_custom_call.1} parent=1 // pred_check
      _
    $region15: #{tpu_custom_call.1} parent=1 // pred_check_branch
      %56 = sbr.rel (0) target = $region17
    $region16: #{tpu_custom_call.1} parent=1 // pred_region
      %s58 = ssub.s32 2048, 2048
      %59 = vsyncadd [#allocation9], %s58
      %s60 = sshll.u32 [#allocation8], 4
      %s61 = int_to_ptr.vmem [resolvable:$true] %s60
      %66 = dma.hbm_to_vmem [thread:$0]  %s3, 2048, %s61, [#allocation9], 256, 256, 16
    $region17: #{tpu_custom_call.1} parent=1 // pred_fallthru
      _
    // Predicated region
    $region18: #{tpu_custom_call.1} parent=1 // pred_check
      _
    $region19: #{tpu_custom_call.1} parent=1 // pred_check_branch
      %68 = sbr.rel (0) target = $region21
    $region20: #{tpu_custom_call.1} parent=1 // pred_region
      %s70 = ssub.s32 2048, 2048
      %71 = vsyncadd [#allocation9], %s70
      %s72 = sshll.u32 [#allocation10], 4
      %s73 = int_to_ptr.vmem [resolvable:$true] %s72
      %78 = dma.hbm_to_vmem [thread:$0]  %s4, 2048, %s73, [#allocation9], 128, 128, 8
    $region21: #{tpu_custom_call.1} parent=1 // pred_fallthru
      _
    // Predicated region
    $region22: #{tpu_custom_call.1} parent=1 // pred_check
      _
    $region23: #{tpu_custom_call.1} parent=1 // pred_check_branch
      %80 = sbr.rel (0) target = $region25
    $region24: #{tpu_custom_call.1} parent=1 // pred_region
      %s82 = ssub.s32 256, 256
      %83 = vsyncadd [#allocation12], %s82
      %s85 = sshll.u32 [#allocation11], 4
      %s86 = int_to_ptr.vmem [resolvable:$true] %s85
      %88 = dma.hbm_to_vmem [thread:$0]  %s5, 256, %s86, [#allocation12]
    $region25: #{tpu_custom_call.1} parent=1 // pred_fallthru
      _
    // Predicated region
    $region26: #{tpu_custom_call.1} parent=1 // pred_check
      _
    $region27: #{tpu_custom_call.1} parent=1 // pred_check_branch
      %90 = sbr.rel (0) target = $region29
    $region28: #{tpu_custom_call.1} parent=1 // pred_region
      %91 = dma.done [#allocation3], 512
    $region29: #{tpu_custom_call.1} parent=1 // pred_fallthru
      _
    // Predicated region
    $region30: #{tpu_custom_call.1} parent=1 // pred_check
      _
    $region31: #{tpu_custom_call.1} parent=1 // pred_check_branch
      %93 = sbr.rel (0) target = $region33
    $region32: #{tpu_custom_call.1} parent=1 // pred_region
      %94 = dma.done [#allocation6], 640
    $region33: #{tpu_custom_call.1} parent=1 // pred_fallthru
      _
    // Predicated region
    $region34: #{tpu_custom_call.1} parent=1 // pred_check
      _
    $region35: #{tpu_custom_call.1} parent=1 // pred_check_branch
      %96 = sbr.rel (0) target = $region37
    $region36: #{tpu_custom_call.1} parent=1 // pred_region
      %97 = dma.done [#allocation6], 1280
    $region37: #{tpu_custom_call.1} parent=1 // pred_fallthru
      _
    // Predicated region
    $region38: #{tpu_custom_call.1} parent=1 // pred_check
      _
    $region39: #{tpu_custom_call.1} parent=1 // pred_check_branch
      %99 = sbr.rel (0) target = $region41
    $region40: #{tpu_custom_call.1} parent=1 // pred_region
      %100 = dma.done [#allocation9], 2048
    $region41: #{tpu_custom_call.1} parent=1 // pred_fallthru
      _
    // Predicated region
    $region42: #{tpu_custom_call.1} parent=1 // pred_check
      _
    $region43: #{tpu_custom_call.1} parent=1 // pred_check_branch
      %102 = sbr.rel (0) target = $region45
    $region44: #{tpu_custom_call.1} parent=1 // pred_region
      %103 = dma.done [#allocation9], 2048
    $region45: #{tpu_custom_call.1} parent=1 // pred_fallthru
      _
    // Predicated region
    $region46: #{tpu_custom_call.1} parent=1 // pred_check
      _
    $region47: #{tpu_custom_call.1} parent=1 // pred_check_branch
      %105 = sbr.rel (0) target = $region49
    $region48: #{tpu_custom_call.1} parent=1 // pred_region
      %106 = dma.done [#allocation12], 256
    $region49: #{tpu_custom_call.1} parent=1 // pred_fallthru
      _
    %v108 = vld [vmem:[#allocation2] sm:$0xff]
    %v109 = vld [vmem:[#allocation2 + $0x8] sm:$0xff]
    %v110 = vld [vmem:[#allocation2 + $0x10] sm:$0xff]
    %v111 = vld [vmem:[#allocation2 + $0x18] sm:$0xff]
    %v112 = vpack.c.bf16 %v109, %v108
    %v113 = vld [vmem:[#allocation10] sm:$0xff]
    %v114 = vld [vmem:[#allocation10 + $0x8] sm:$0xff]
    %v115 = vld [vmem:[#allocation10 + $0x10] sm:$0xff]
    %v116 = vld [vmem:[#allocation10 + $0x18] sm:$0xff]
    %v117 = vld [vmem:[#allocation10 + $0x20] sm:$0xff]
    %v118 = vld [vmem:[#allocation10 + $0x28] sm:$0xff]
    %v119 = vld [vmem:[#allocation10 + $0x30] sm:$0xff]
    %v120 = vld [vmem:[#allocation10 + $0x38] sm:$0xff]
    %v121 = vld [vmem:[#allocation10 + $0x40] sm:$0xff]
    %v122 = vld [vmem:[#allocation10 + $0x48] sm:$0xff]
    %v123 = vld [vmem:[#allocation10 + $0x50] sm:$0xff]
    %v124 = vld [vmem:[#allocation10 + $0x58] sm:$0xff]
    %v125 = vld [vmem:[#allocation10 + $0x60] sm:$0xff]
    %v126 = vld [vmem:[#allocation10 + $0x68] sm:$0xff]
    %v127 = vld [vmem:[#allocation10 + $0x70] sm:$0xff]
    %v128 = vld [vmem:[#allocation10 + $0x78] sm:$0xff]
    %v129 = vld [vmem:[#allocation11] sm:$0x3]
    %v131 = vlaneseq
    %v132 = vshrl.u32 %v131, 7
    %v133 = vsub.s32 0, %v132
    %v134 = vrot.slane %v129, %v133
    %v135 = vlaneseq
    %v136 = vshrl.u32 %v135, 7
    %v137 = vsub.s32 1, %v136
    %v138 = vrot.slane %v129, %v137
    %v157 = vunpack.c.l.b16 %v113
    %v158 = vunpack.c.h.b16 %v113
    %v159 = vunpack.c.l.b16 %v114
    %v160 = vunpack.c.h.b16 %v114
    %v161 = vunpack.c.l.b16 %v115
    %v162 = vunpack.c.h.b16 %v115
    %v163 = vunpack.c.l.b16 %v116
    %v164 = vunpack.c.h.b16 %v116
    %v165 = vunpack.c.l.b16 %v117
    %v166 = vunpack.c.h.b16 %v117
    %v167 = vunpack.c.l.b16 %v118
    %v168 = vunpack.c.h.b16 %v118
    %v169 = vunpack.c.l.b16 %v119
    %v170 = vunpack.c.h.b16 %v119
    %v171 = vunpack.c.l.b16 %v120
    %v172 = vunpack.c.h.b16 %v120
    %v173 = vunpack.c.l.b16 %v121
    %v174 = vunpack.c.h.b16 %v121
    %v175 = vunpack.c.l.b16 %v122
    %v176 = vunpack.c.h.b16 %v122
    %v177 = vunpack.c.l.b16 %v123
    %v178 = vunpack.c.h.b16 %v123
    %v179 = vunpack.c.l.b16 %v124
    %v180 = vunpack.c.h.b16 %v124
    %v181 = vunpack.c.l.b16 %v125
    %v182 = vunpack.c.h.b16 %v125
    %v183 = vunpack.c.l.b16 %v126
    %v184 = vunpack.c.h.b16 %v126
    %v185 = vunpack.c.l.b16 %v127
    %v186 = vunpack.c.h.b16 %v127
    %v187 = vunpack.c.l.b16 %v128
    %v188 = vunpack.c.h.b16 %v128
    %v189 = vpack.c.b16 %v159, %v157
    %v190 = vpack.c.b16 %v160, %v158
    %v191 = vpack.c.b16 %v163, %v161
    %v192 = vpack.c.b16 %v164, %v162
    %v193 = vpack.c.b16 %v167, %v165
    %v194 = vpack.c.b16 %v168, %v166
    %v195 = vpack.c.b16 %v171, %v169
    %v196 = vpack.c.b16 %v172, %v170
    %v197 = vpack.c.b16 %v175, %v173
    %v198 = vpack.c.b16 %v176, %v174
    %v199 = vpack.c.b16 %v179, %v177
    %v200 = vpack.c.b16 %v180, %v178
    %v201 = vpack.c.b16 %v183, %v181
    %v202 = vpack.c.b16 %v184, %v182
    %v203 = vpack.c.b16 %v187, %v185
    %v204 = vpack.c.b16 %v188, %v186
    %221 = vmatprep.subr.bf16.mxu0 %v204
    %222 = vmatpush1.bf16.msra.mxu0 %v203
    %223 = vmatprep.subr.bf16.mxu0 %v202
    %224 = vmatpush1.bf16.msra.mxu0 %v201
    %225 = vmatprep.subr.bf16.mxu0 %v200
    %226 = vmatpush1.bf16.msra.mxu0 %v199
    %227 = vmatprep.subr.bf16.mxu0 %v198
    %228 = vmatpush1.bf16.msra.mxu0 %v197
    %229 = vmatprep.subr.bf16.mxu0 %v196
    %230 = vmatpush1.bf16.msra.mxu0 %v195
    %231 = vmatprep.subr.bf16.mxu0 %v194
    %232 = vmatpush1.bf16.msra.mxu0 %v193
    %233 = vmatprep.subr.bf16.mxu0 %v192
    %234 = vmatpush1.bf16.msra.mxu0 %v191
    %235 = vmatprep.subr.bf16.mxu0 %v190
    %236 = vmatpush1.bf16.msra.mxu0 %v189
    %237 = vmatprep.subr.bf16.mxu0 0
    %238 = vmatpush2.bf16.msra.mxu0 0
    %239 = vmatprep.subr.bf16.mxu0 0
    %240 = vmatpush2.bf16.msra.mxu0 0
    %241 = vmatprep.subr.bf16.mxu0 0
    %242 = vmatpush2.bf16.msra.mxu0 0
    %243 = vmatprep.subr.bf16.mxu0 0
    %244 = vmatpush2.bf16.msra.mxu0 0
    %245 = vmatprep.subr.bf16.mxu0 0
    %246 = vmatpush2.bf16.msra.mxu0 0
    %247 = vmatprep.subr.bf16.mxu0 0
    %248 = vmatpush2.bf16.msra.mxu0 0
    %249 = vmatprep.subr.bf16.mxu0 0
    %250 = vmatpush2.bf16.msra.mxu0 0
    %251 = vmatprep.subr.bf16.mxu0 0
    %252 = vmatpush2.bf16.msra.mxu0 0
    %253 = vmatprep.mubr.bf16.mxu0 0
    %254 = vmatmul.mubr.bf16.gmra.mxu0 %v112
    %v255 = vpop.f32.mrf.mxu0
    %v256 = vadd.f32 %v134, %v255
    %v257 = vpop.f32.mrf.mxu0
    %v258 = vadd.f32 %v138, %v257
    %v259 = vpop.f32.mrf.mxu0
    %v260 = vadd.f32 %v134, %v259
    %v261 = vpop.f32.mrf.mxu0
    %v262 = vadd.f32 %v138, %v261
    %263 = vdwg.mxu0
    %v264 = vmax.f32 %v256, 0.0
    %v265 = vmax.f32 %v260, 0.0
    %v266 = vpack.c.bf16 %v265, %v264
    %v267 = vld [vmem:[#allocation5] sm:$0xf]
    %v268 = vld [vmem:[#allocation5 + $0x14] sm:$0xf]
    %v269 = vld [vmem:[#allocation11 + $0x2] sm:$0x1]
    %v271 = vlaneseq
    %v272 = vshrl.u32 %v271, 7
    %v273 = vsub.s32 0, %v272
    %v274 = vrot.slane %v269, %v273
    %v278 = vunpack.c.l.b16 %v267
    %v279 = vunpack.c.l.b16 %v268
    %v280 = vpack.c.b16 %v279, %v278
    %vm282 = vcmask 130048
    %v284 = vsel %vm282, %v266, 0
    %286 = vmatprep.subr.bf16.mxu0 0
    %287 = vmatpush1.bf16.msra.mxu0 0
    %288 = vmatprep.subr.bf16.mxu0 0
    %289 = vmatpush1.bf16.msra.mxu0 0
    %290 = vmatprep.subr.bf16.mxu0 0
    %291 = vmatpush1.bf16.msra.mxu0 0
    %292 = vmatprep.subr.bf16.mxu0 0
    %293 = vmatpush1.bf16.msra.mxu0 0
    %294 = vmatprep.subr.bf16.mxu0 0
    %295 = vmatpush1.bf16.msra.mxu0 0
    %296 = vmatprep.subr.bf16.mxu0 0
    %297 = vmatpush1.bf16.msra.mxu0 0
    %298 = vmatprep.subr.bf16.mxu0 0
    %299 = vmatpush1.bf16.msra.mxu0 0
    %300 = vmatprep.subr.bf16.mxu0 0
    %301 = vmatpush1.bf16.msra.mxu0 %v280
    %302 = vmatprep.subr.bf16.mxu0 0
    %303 = vmatpush2.bf16.msra.mxu0 0
    %304 = vmatprep.subr.bf16.mxu0 0
    %305 = vmatpush2.bf16.msra.mxu0 0
    %306 = vmatprep.subr.bf16.mxu0 0
    %307 = vmatpush2.bf16.msra.mxu0 0
    %308 = vmatprep.subr.bf16.mxu0 0
    %309 = vmatpush2.bf16.msra.mxu0 0
    %310 = vmatprep.subr.bf16.mxu0 0
    %311 = vmatpush2.bf16.msra.mxu0 0
    %312 = vmatprep.subr.bf16.mxu0 0
    %313 = vmatpush2.bf16.msra.mxu0 0
    %314 = vmatprep.subr.bf16.mxu0 0
    %315 = vmatpush2.bf16.msra.mxu0 0
    %316 = vmatprep.subr.bf16.mxu0 0
    %317 = vmatpush2.bf16.msra.mxu0 0
    %318 = vmatprep.mubr.bf16.mxu0 0
    %319 = vmatmul.mubr.bf16.gmra.mxu0 %v284
    %v320 = vpop.f32.mrf.mxu0
    %v321 = vadd.f32 %v274, %v320
    %v322 = vpop.f32.mrf.mxu0
    %v323 = vpop.f32.mrf.mxu0
    %v324 = vadd.f32 %v274, %v323
    %v325 = vpop.f32.mrf.mxu0
    %326 = vdwg.mxu0
    %v327 = vadd.f32 %v321, %v258
    %v328 = vadd.f32 %v324, %v262
    %v329 = vmax.f32 %v327, 0.0
    %v330 = vmax.f32 %v328, 0.0
    %v331 = vpack.c.bf16 %v330, %v329
    %v332 = vld [vmem:[#allocation5 + $0x4] sm:$0xf]
    %v333 = vld [vmem:[#allocation5 + $0x18] sm:$0xf]
    %v334 = vld [vmem:[#allocation11 + $0x3] sm:$0x1]
    %v336 = vlaneseq
    %v337 = vshrl.u32 %v336, 7
    %v338 = vsub.s32 0, %v337
    %v339 = vrot.slane %v334, %v338
    %v343 = vunpack.c.l.b16 %v332
    %v344 = vunpack.c.l.b16 %v333
    %v345 = vpack.c.b16 %v344, %v343
    %v348 = vsel %vm282, %v331, 0
    %350 = vmatprep.subr.bf16.mxu0 0
    %351 = vmatpush1.bf16.msra.mxu0 0
    %352 = vmatprep.subr.bf16.mxu0 0
    %353 = vmatpush1.bf16.msra.mxu0 0
    %354 = vmatprep.subr.bf16.mxu0 0
    %355 = vmatpush1.bf16.msra.mxu0 0
    %356 = vmatprep.subr.bf16.mxu0 0
    %357 = vmatpush1.bf16.msra.mxu0 0
    %358 = vmatprep.subr.bf16.mxu0 0
    %359 = vmatpush1.bf16.msra.mxu0 0
    %360 = vmatprep.subr.bf16.mxu0 0
    %361 = vmatpush1.bf16.msra.mxu0 0
    %362 = vmatprep.subr.bf16.mxu0 0
    %363 = vmatpush1.bf16.msra.mxu0 0
    %364 = vmatprep.subr.bf16.mxu0 0
    %365 = vmatpush1.bf16.msra.mxu0 %v345
    %366 = vmatprep.subr.bf16.mxu0 0
    %367 = vmatpush2.bf16.msra.mxu0 0
    %368 = vmatprep.subr.bf16.mxu0 0
    %369 = vmatpush2.bf16.msra.mxu0 0
    %370 = vmatprep.subr.bf16.mxu0 0
    %371 = vmatpush2.bf16.msra.mxu0 0
    %372 = vmatprep.subr.bf16.mxu0 0
    %373 = vmatpush2.bf16.msra.mxu0 0
    %374 = vmatprep.subr.bf16.mxu0 0
    %375 = vmatpush2.bf16.msra.mxu0 0
    %376 = vmatprep.subr.bf16.mxu0 0
    %377 = vmatpush2.bf16.msra.mxu0 0
    %378 = vmatprep.subr.bf16.mxu0 0
    %379 = vmatpush2.bf16.msra.mxu0 0
    %380 = vmatprep.subr.bf16.mxu0 0
    %381 = vmatpush2.bf16.msra.mxu0 0
    %382 = vmatprep.mubr.bf16.mxu0 0
    %383 = vmatmul.mubr.bf16.gmra.mxu0 %v348
    %v384 = vpop.f32.mrf.mxu0
    %v385 = vadd.f32 %v339, %v384
    %v386 = vpop.f32.mrf.mxu0
    %v387 = vpop.f32.mrf.mxu0
    %v388 = vadd.f32 %v339, %v387
    %v389 = vpop.f32.mrf.mxu0
    %390 = vdwg.mxu0
    %v391 = vmax.f32 %v385, 0.0
    %v392 = vmax.f32 %v388, 0.0
    %v393 = vpack.c.bf16 %v392, %v391
    %v394 = vld [vmem:[#allocation5 + $0x8] sm:$0xf]
    %v395 = vld [vmem:[#allocation5 + $0x1c] sm:$0xf]
    %v396 = vld [vmem:[#allocation11 + $0x4] sm:$0x1]
    %v398 = vlaneseq
    %v399 = vshrl.u32 %v398, 7
    %v400 = vsub.s32 0, %v399
    %v401 = vrot.slane %v396, %v400
    %v405 = vunpack.c.l.b16 %v394
    %v406 = vunpack.c.l.b16 %v395
    %v407 = vpack.c.b16 %v406, %v405
    %v410 = vsel %vm282, %v393, 0
    %412 = vmatprep.subr.bf16.mxu0 0
    %413 = vmatpush1.bf16.msra.mxu0 0
    %414 = vmatprep.subr.bf16.mxu0 0
    %415 = vmatpush1.bf16.msra.mxu0 0
    %416 = vmatprep.subr.bf16.mxu0 0
    %417 = vmatpush1.bf16.msra.mxu0 0
    %418 = vmatprep.subr.bf16.mxu0 0
    %419 = vmatpush1.bf16.msra.mxu0 0
    %420 = vmatprep.subr.bf16.mxu0 0
    %421 = vmatpush1.bf16.msra.mxu0 0
    %422 = vmatprep.subr.bf16.mxu0 0
    %423 = vmatpush1.bf16.msra.mxu0 0
    %424 = vmatprep.subr.bf16.mxu0 0
    %425 = vmatpush1.bf16.msra.mxu0 0
    %426 = vmatprep.subr.bf16.mxu0 0
    %427 = vmatpush1.bf16.msra.mxu0 %v407
    %428 = vmatprep.subr.bf16.mxu0 0
    %429 = vmatpush2.bf16.msra.mxu0 0
    %430 = vmatprep.subr.bf16.mxu0 0
    %431 = vmatpush2.bf16.msra.mxu0 0
    %432 = vmatprep.subr.bf16.mxu0 0
    %433 = vmatpush2.bf16.msra.mxu0 0
    %434 = vmatprep.subr.bf16.mxu0 0
    %435 = vmatpush2.bf16.msra.mxu0 0
    %436 = vmatprep.subr.bf16.mxu0 0
    %437 = vmatpush2.bf16.msra.mxu0 0
    %438 = vmatprep.subr.bf16.mxu0 0
    %439 = vmatpush2.bf16.msra.mxu0 0
    %440 = vmatprep.subr.bf16.mxu0 0
    %441 = vmatpush2.bf16.msra.mxu0 0
    %442 = vmatprep.subr.bf16.mxu0 0
    %443 = vmatpush2.bf16.msra.mxu0 0
    %444 = vmatprep.mubr.bf16.mxu0 0
    %445 = vmatmul.mubr.bf16.gmra.mxu0 %v410
    %v446 = vpop.f32.mrf.mxu0
    %v447 = vadd.f32 %v401, %v446
    %v448 = vpop.f32.mrf.mxu0
    %v449 = vpop.f32.mrf.mxu0
    %v450 = vadd.f32 %v401, %v449
    %v451 = vpop.f32.mrf.mxu0
    %452 = vdwg.mxu0
    %v453 = vadd.f32 %v447, %v329
    %v454 = vadd.f32 %v450, %v330
    %v455 = vmax.f32 %v453, 0.0
    %v456 = vmax.f32 %v454, 0.0
    %v457 = vpack.c.bf16 %v456, %v455
    %v458 = vld [vmem:[#allocation5 + $0xc] sm:$0xff]
    %v459 = vld [vmem:[#allocation5 + $0x20] sm:$0xff]
    %v460 = vld [vmem:[#allocation11 + $0x5] sm:$0x3]
    %v462 = vlaneseq
    %v463 = vshrl.u32 %v462, 7
    %v464 = vsub.s32 0, %v463
    %v465 = vrot.slane %v460, %v464
    %v466 = vlaneseq
    %v467 = vshrl.u32 %v466, 7
    %v468 = vsub.s32 1, %v467
    %v469 = vrot.slane %v460, %v468
    %v474 = vunpack.c.l.b16 %v458
    %v475 = vunpack.c.h.b16 %v458
    %v476 = vunpack.c.l.b16 %v459
    %v477 = vunpack.c.h.b16 %v459
    %v478 = vpack.c.b16 %v476, %v474
    %v479 = vpack.c.b16 %v477, %v475
    %v483 = vsel %vm282, %v457, 0
    %485 = vmatprep.subr.bf16.mxu0 0
    %486 = vmatpush1.bf16.msra.mxu0 0
    %487 = vmatprep.subr.bf16.mxu0 0
    %488 = vmatpush1.bf16.msra.mxu0 0
    %489 = vmatprep.subr.bf16.mxu0 0
    %490 = vmatpush1.bf16.msra.mxu0 0
    %491 = vmatprep.subr.bf16.mxu0 0
    %492 = vmatpush1.bf16.msra.mxu0 0
    %493 = vmatprep.subr.bf16.mxu0 0
    %494 = vmatpush1.bf16.msra.mxu0 0
    %495 = vmatprep.subr.bf16.mxu0 0
    %496 = vmatpush1.bf16.msra.mxu0 0
    %497 = vmatprep.subr.bf16.mxu0 0
    %498 = vmatpush1.bf16.msra.mxu0 0
    %499 = vmatprep.subr.bf16.mxu0 %v479
    %500 = vmatpush1.bf16.msra.mxu0 %v478
    %501 = vmatprep.subr.bf16.mxu0 0
    %502 = vmatpush2.bf16.msra.mxu0 0
    %503 = vmatprep.subr.bf16.mxu0 0
    %504 = vmatpush2.bf16.msra.mxu0 0
    %505 = vmatprep.subr.bf16.mxu0 0
    %506 = vmatpush2.bf16.msra.mxu0 0
    %507 = vmatprep.subr.bf16.mxu0 0
    %508 = vmatpush2.bf16.msra.mxu0 0
    %509 = vmatprep.subr.bf16.mxu0 0
    %510 = vmatpush2.bf16.msra.mxu0 0
    %511 = vmatprep.subr.bf16.mxu0 0
    %512 = vmatpush2.bf16.msra.mxu0 0
    %513 = vmatprep.subr.bf16.mxu0 0
    %514 = vmatpush2.bf16.msra.mxu0 0
    %515 = vmatprep.subr.bf16.mxu0 0
    %516 = vmatpush2.bf16.msra.mxu0 0
    %517 = vmatprep.mubr.bf16.mxu0 0
    %518 = vmatmul.mubr.bf16.gmra.mxu0 %v483
    %v519 = vpop.f32.mrf.mxu0
    %v520 = vadd.f32 %v465, %v519
    %v521 = vpop.f32.mrf.mxu0
    %v522 = vadd.f32 %v469, %v521
    %v523 = vpop.f32.mrf.mxu0
    %v524 = vadd.f32 %v465, %v523
    %v525 = vpop.f32.mrf.mxu0
    %v526 = vadd.f32 %v469, %v525
    %527 = vdwg.mxu0
    %v528 = vmax.f32 %v520, 0.0
    %v529 = vmax.f32 %v524, 0.0
    %v530 = vpack.c.bf16 %v529, %v528
    %v531 = vld [vmem:[#allocation7] sm:$0xf]
    %v532 = vld [vmem:[#allocation7 + $0x14] sm:$0xf]
    %v533 = vld [vmem:[#allocation7 + $0x28] sm:$0xf]
    %v534 = vld [vmem:[#allocation7 + $0x3c] sm:$0xf]
    %v535 = vld [vmem:[#allocation11 + $0x7] sm:$0x1]
    %v537 = vlaneseq
    %v538 = vshrl.u32 %v537, 7
    %v539 = vsub.s32 0, %v538
    %v540 = vrot.slane %v535, %v539
    %v546 = vunpack.c.l.b16 %v531
    %v547 = vunpack.c.l.b16 %v532
    %v548 = vunpack.c.l.b16 %v533
    %v549 = vunpack.c.l.b16 %v534
    %v550 = vpack.c.b16 %v547, %v546
    %v551 = vpack.c.b16 %v549, %v548
    %vm554 = vcmask 261120
    %v556 = vsel %vm554, %v530, 0
    %558 = vmatprep.subr.bf16.mxu0 0
    %559 = vmatpush1.bf16.msra.mxu0 0
    %560 = vmatprep.subr.bf16.mxu0 0
    %561 = vmatpush1.bf16.msra.mxu0 0
    %562 = vmatprep.subr.bf16.mxu0 0
    %563 = vmatpush1.bf16.msra.mxu0 0
    %564 = vmatprep.subr.bf16.mxu0 0
    %565 = vmatpush1.bf16.msra.mxu0 0
    %566 = vmatprep.subr.bf16.mxu0 0
    %567 = vmatpush1.bf16.msra.mxu0 0
    %568 = vmatprep.subr.bf16.mxu0 0
    %569 = vmatpush1.bf16.msra.mxu0 0
    %570 = vmatprep.subr.bf16.mxu0 0
    %571 = vmatpush1.bf16.msra.mxu0 %v551
    %572 = vmatprep.subr.bf16.mxu0 0
    %573 = vmatpush1.bf16.msra.mxu0 %v550
    %574 = vmatprep.subr.bf16.mxu0 0
    %575 = vmatpush2.bf16.msra.mxu0 0
    %576 = vmatprep.subr.bf16.mxu0 0
    %577 = vmatpush2.bf16.msra.mxu0 0
    %578 = vmatprep.subr.bf16.mxu0 0
    %579 = vmatpush2.bf16.msra.mxu0 0
    %580 = vmatprep.subr.bf16.mxu0 0
    %581 = vmatpush2.bf16.msra.mxu0 0
    %582 = vmatprep.subr.bf16.mxu0 0
    %583 = vmatpush2.bf16.msra.mxu0 0
    %584 = vmatprep.subr.bf16.mxu0 0
    %585 = vmatpush2.bf16.msra.mxu0 0
    %586 = vmatprep.subr.bf16.mxu0 0
    %587 = vmatpush2.bf16.msra.mxu0 0
    %588 = vmatprep.subr.bf16.mxu0 0
    %589 = vmatpush2.bf16.msra.mxu0 0
    %590 = vmatprep.mubr.bf16.mxu0 0
    %591 = vmatmul.mubr.bf16.gmra.mxu0 %v556
    %v592 = vpop.f32.mrf.mxu0
    %v593 = vadd.f32 %v540, %v592
    %v594 = vpop.f32.mrf.mxu0
    %v595 = vpop.f32.mrf.mxu0
    %v596 = vadd.f32 %v540, %v595
    %v597 = vpop.f32.mrf.mxu0
    %598 = vdwg.mxu0
    %v599 = vadd.f32 %v593, %v522
    %v600 = vadd.f32 %v596, %v526
    %v601 = vmax.f32 %v599, 0.0
    %v602 = vmax.f32 %v600, 0.0
    %v603 = vpack.c.bf16 %v602, %v601
    %v604 = vld [vmem:[#allocation7 + $0x4] sm:$0xf]
    %v605 = vld [vmem:[#allocation7 + $0x18] sm:$0xf]
    %v606 = vld [vmem:[#allocation7 + $0x2c] sm:$0xf]
    %v607 = vld [vmem:[#allocation7 + $0x40] sm:$0xf]
    %v608 = vld [vmem:[#allocation11 + $0x8] sm:$0x1]
    %v610 = vlaneseq
    %v611 = vshrl.u32 %v610, 7
    %v612 = vsub.s32 0, %v611
    %v613 = vrot.slane %v608, %v612
    %v619 = vunpack.c.l.b16 %v604
    %v620 = vunpack.c.l.b16 %v605
    %v621 = vunpack.c.l.b16 %v606
    %v622 = vunpack.c.l.b16 %v607
    %v623 = vpack.c.b16 %v620, %v619
    %v624 = vpack.c.b16 %v622, %v621
    %v628 = vsel %vm554, %v603, 0
    %630 = vmatprep.subr.bf16.mxu0 0
    %631 = vmatpush1.bf16.msra.mxu0 0
    %632 = vmatprep.subr.bf16.mxu0 0
    %633 = vmatpush1.bf16.msra.mxu0 0
    %634 = vmatprep.subr.bf16.mxu0 0
    %635 = vmatpush1.bf16.msra.mxu0 0
    %636 = vmatprep.subr.bf16.mxu0 0
    %637 = vmatpush1.bf16.msra.mxu0 0
    %638 = vmatprep.subr.bf16.mxu0 0
    %639 = vmatpush1.bf16.msra.mxu0 0
    %640 = vmatprep.subr.bf16.mxu0 0
    %641 = vmatpush1.bf16.msra.mxu0 0
    %642 = vmatprep.subr.bf16.mxu0 0
    %643 = vmatpush1.bf16.msra.mxu0 %v624
    %644 = vmatprep.subr.bf16.mxu0 0
    %645 = vmatpush1.bf16.msra.mxu0 %v623
    %646 = vmatprep.subr.bf16.mxu0 0
    %647 = vmatpush2.bf16.msra.mxu0 0
    %648 = vmatprep.subr.bf16.mxu0 0
    %649 = vmatpush2.bf16.msra.mxu0 0
    %650 = vmatprep.subr.bf16.mxu0 0
    %651 = vmatpush2.bf16.msra.mxu0 0
    %652 = vmatprep.subr.bf16.mxu0 0
    %653 = vmatpush2.bf16.msra.mxu0 0
    %654 = vmatprep.subr.bf16.mxu0 0
    %655 = vmatpush2.bf16.msra.mxu0 0
    %656 = vmatprep.subr.bf16.mxu0 0
    %657 = vmatpush2.bf16.msra.mxu0 0
    %658 = vmatprep.subr.bf16.mxu0 0
    %659 = vmatpush2.bf16.msra.mxu0 0
    %660 = vmatprep.subr.bf16.mxu0 0
    %661 = vmatpush2.bf16.msra.mxu0 0
    %662 = vmatprep.mubr.bf16.mxu0 0
    %663 = vmatmul.mubr.bf16.gmra.mxu0 %v628
    %v664 = vpop.f32.mrf.mxu0
    %v665 = vadd.f32 %v613, %v664
    %v666 = vpop.f32.mrf.mxu0
    %v667 = vpop.f32.mrf.mxu0
    %v668 = vadd.f32 %v613, %v667
    %v669 = vpop.f32.mrf.mxu0
    %670 = vdwg.mxu0
    %v671 = vmax.f32 %v665, 0.0
    %v672 = vmax.f32 %v668, 0.0
    %v673 = vpack.c.bf16 %v672, %v671
    %v674 = vld [vmem:[#allocation7 + $0x8] sm:$0xf]
    %v675 = vld [vmem:[#allocation7 + $0x1c] sm:$0xf]
    %v676 = vld [vmem:[#allocation7 + $0x30] sm:$0xf]
    %v677 = vld [vmem:[#allocation7 + $0x44] sm:$0xf]
    %v678 = vld [vmem:[#allocation11 + $0x9] sm:$0x1]
    %v680 = vlaneseq
    %v681 = vshrl.u32 %v680, 7
    %v682 = vsub.s32 0, %v681
    %v683 = vrot.slane %v678, %v682
    %v689 = vunpack.c.l.b16 %v674
    %v690 = vunpack.c.l.b16 %v675
    %v691 = vunpack.c.l.b16 %v676
    %v692 = vunpack.c.l.b16 %v677
    %v693 = vpack.c.b16 %v690, %v689
    %v694 = vpack.c.b16 %v692, %v691
    %v698 = vsel %vm554, %v673, 0
    %700 = vmatprep.subr.bf16.mxu0 0
    %701 = vmatpush1.bf16.msra.mxu0 0
    %702 = vmatprep.subr.bf16.mxu0 0
    %703 = vmatpush1.bf16.msra.mxu0 0
    %704 = vmatprep.subr.bf16.mxu0 0
    %705 = vmatpush1.bf16.msra.mxu0 0
    %706 = vmatprep.subr.bf16.mxu0 0
    %707 = vmatpush1.bf16.msra.mxu0 0
    %708 = vmatprep.subr.bf16.mxu0 0
    %709 = vmatpush1.bf16.msra.mxu0 0
    %710 = vmatprep.subr.bf16.mxu0 0
    %711 = vmatpush1.bf16.msra.mxu0 0
    %712 = vmatprep.subr.bf16.mxu0 0
    %713 = vmatpush1.bf16.msra.mxu0 %v694
    %714 = vmatprep.subr.bf16.mxu0 0
    %715 = vmatpush1.bf16.msra.mxu0 %v693
    %716 = vmatprep.subr.bf16.mxu0 0
    %717 = vmatpush2.bf16.msra.mxu0 0
    %718 = vmatprep.subr.bf16.mxu0 0
    %719 = vmatpush2.bf16.msra.mxu0 0
    %720 = vmatprep.subr.bf16.mxu0 0
    %721 = vmatpush2.bf16.msra.mxu0 0
    %722 = vmatprep.subr.bf16.mxu0 0
    %723 = vmatpush2.bf16.msra.mxu0 0
    %724 = vmatprep.subr.bf16.mxu0 0
    %725 = vmatpush2.bf16.msra.mxu0 0
    %726 = vmatprep.subr.bf16.mxu0 0
    %727 = vmatpush2.bf16.msra.mxu0 0
    %728 = vmatprep.subr.bf16.mxu0 0
    %729 = vmatpush2.bf16.msra.mxu0 0
    %730 = vmatprep.subr.bf16.mxu0 0
    %731 = vmatpush2.bf16.msra.mxu0 0
    %732 = vmatprep.mubr.bf16.mxu0 0
    %733 = vmatmul.mubr.bf16.gmra.mxu0 %v698
    %v734 = vpop.f32.mrf.mxu0
    %v735 = vadd.f32 %v683, %v734
    %v736 = vpop.f32.mrf.mxu0
    %v737 = vpop.f32.mrf.mxu0
    %v738 = vadd.f32 %v683, %v737
    %v739 = vpop.f32.mrf.mxu0
    %740 = vdwg.mxu0
    %v741 = vadd.f32 %v735, %v601
    %v742 = vadd.f32 %v738, %v602
    %v743 = vmax.f32 %v741, 0.0
    %v744 = vmax.f32 %v742, 0.0
    %v745 = vpack.c.bf16 %v744, %v743
    %v746 = vld [vmem:[#allocation7 + $0xc] sm:$0xff]
    %v747 = vld [vmem:[#allocation7 + $0x20] sm:$0xff]
    %v748 = vld [vmem:[#allocation7 + $0x34] sm:$0xff]
    %v749 = vld [vmem:[#allocation7 + $0x48] sm:$0xff]
    %v750 = vld [vmem:[#allocation11 + $0xa] sm:$0x3]
    %v752 = vlaneseq
    %v753 = vshrl.u32 %v752, 7
    %v754 = vsub.s32 0, %v753
    %v755 = vrot.slane %v750, %v754
    %v756 = vlaneseq
    %v757 = vshrl.u32 %v756, 7
    %v758 = vsub.s32 1, %v757
    %v759 = vrot.slane %v750, %v758
    %v766 = vunpack.c.l.b16 %v746
    %v767 = vunpack.c.h.b16 %v746
    %v768 = vunpack.c.l.b16 %v747
    %v769 = vunpack.c.h.b16 %v747
    %v770 = vunpack.c.l.b16 %v748
    %v771 = vunpack.c.h.b16 %v748
    %v772 = vunpack.c.l.b16 %v749
    %v773 = vunpack.c.h.b16 %v749
    %v774 = vpack.c.b16 %v768, %v766
    %v775 = vpack.c.b16 %v769, %v767
    %v776 = vpack.c.b16 %v772, %v770
    %v777 = vpack.c.b16 %v773, %v771
    %v783 = vsel %vm554, %v745, 0
    %785 = vmatprep.subr.bf16.mxu0 0
    %786 = vmatpush1.bf16.msra.mxu0 0
    %787 = vmatprep.subr.bf16.mxu0 0
    %788 = vmatpush1.bf16.msra.mxu0 0
    %789 = vmatprep.subr.bf16.mxu0 0
    %790 = vmatpush1.bf16.msra.mxu0 0
    %791 = vmatprep.subr.bf16.mxu0 0
    %792 = vmatpush1.bf16.msra.mxu0 0
    %793 = vmatprep.subr.bf16.mxu0 0
    %794 = vmatpush1.bf16.msra.mxu0 0
    %795 = vmatprep.subr.bf16.mxu0 0
    %796 = vmatpush1.bf16.msra.mxu0 0
    %797 = vmatprep.subr.bf16.mxu0 %v777
    %798 = vmatpush1.bf16.msra.mxu0 %v776
    %799 = vmatprep.subr.bf16.mxu0 %v775
    %800 = vmatpush1.bf16.msra.mxu0 %v774
    %801 = vmatprep.subr.bf16.mxu0 0
    %802 = vmatpush2.bf16.msra.mxu0 0
    %803 = vmatprep.subr.bf16.mxu0 0
    %804 = vmatpush2.bf16.msra.mxu0 0
    %805 = vmatprep.subr.bf16.mxu0 0
    %806 = vmatpush2.bf16.msra.mxu0 0
    %807 = vmatprep.subr.bf16.mxu0 0
    %808 = vmatpush2.bf16.msra.mxu0 0
    %809 = vmatprep.subr.bf16.mxu0 0
    %810 = vmatpush2.bf16.msra.mxu0 0
    %811 = vmatprep.subr.bf16.mxu0 0
    %812 = vmatpush2.bf16.msra.mxu0 0
    %813 = vmatprep.subr.bf16.mxu0 0
    %814 = vmatpush2.bf16.msra.mxu0 0
    %815 = vmatprep.subr.bf16.mxu0 0
    %816 = vmatpush2.bf16.msra.mxu0 0
    %817 = vmatprep.mubr.bf16.mxu0 0
    %818 = vmatmul.mubr.bf16.gmra.mxu0 %v783
    %v819 = vpop.f32.mrf.mxu0
    %v820 = vadd.f32 %v755, %v819
    %v821 = vpop.f32.mrf.mxu0
    %v822 = vadd.f32 %v759, %v821
    %v823 = vpop.f32.mrf.mxu0
    %v824 = vadd.f32 %v755, %v823
    %v825 = vpop.f32.mrf.mxu0
    %v826 = vadd.f32 %v759, %v825
    %827 = vdwg.mxu0
    %v828 = vmax.f32 %v820, 0.0
    %v829 = vmax.f32 %v824, 0.0
    %v830 = vpack.c.bf16 %v829, %v828
    %v831 = vld [vmem:[#allocation8] sm:$0xf]
    %v832 = vld [vmem:[#allocation8 + $0x10] sm:$0xf]
    %v833 = vld [vmem:[#allocation8 + $0x20] sm:$0xf]
    %v834 = vld [vmem:[#allocation8 + $0x30] sm:$0xf]
    %v835 = vld [vmem:[#allocation8 + $0x40] sm:$0xf]
    %v836 = vld [vmem:[#allocation8 + $0x50] sm:$0xf]
    %v837 = vld [vmem:[#allocation8 + $0x60] sm:$0xf]
    %v838 = vld [vmem:[#allocation8 + $0x70] sm:$0xf]
    %v839 = vld [vmem:[#allocation11 + $0xc] sm:$0x1]
    %v841 = vlaneseq
    %v842 = vshrl.u32 %v841, 7
    %v843 = vsub.s32 0, %v842
    %v844 = vrot.slane %v839, %v843
    %v854 = vunpack.c.l.b16 %v831
    %v855 = vunpack.c.l.b16 %v832
    %v856 = vunpack.c.l.b16 %v833
    %v857 = vunpack.c.l.b16 %v834
    %v858 = vunpack.c.l.b16 %v835
    %v859 = vunpack.c.l.b16 %v836
    %v860 = vunpack.c.l.b16 %v837
    %v861 = vunpack.c.l.b16 %v838
    %v862 = vpack.c.b16 %v855, %v854
    %v863 = vpack.c.b16 %v857, %v856
    %v864 = vpack.c.b16 %v859, %v858
    %v865 = vpack.c.b16 %v861, %v860
    %vm870 = vcmask 523264
    %v872 = vsel %vm870, %v830, 0
    %874 = vmatprep.subr.bf16.mxu0 0
    %875 = vmatpush1.bf16.msra.mxu0 0
    %876 = vmatprep.subr.bf16.mxu0 0
    %877 = vmatpush1.bf16.msra.mxu0 0
    %878 = vmatprep.subr.bf16.mxu0 0
    %879 = vmatpush1.bf16.msra.mxu0 0
    %880 = vmatprep.subr.bf16.mxu0 0
    %881 = vmatpush1.bf16.msra.mxu0 0
    %882 = vmatprep.subr.bf16.mxu0 0
    %883 = vmatpush1.bf16.msra.mxu0 %v865
    %884 = vmatprep.subr.bf16.mxu0 0
    %885 = vmatpush1.bf16.msra.mxu0 %v864
    %886 = vmatprep.subr.bf16.mxu0 0
    %887 = vmatpush1.bf16.msra.mxu0 %v863
    %888 = vmatprep.subr.bf16.mxu0 0
    %889 = vmatpush1.bf16.msra.mxu0 %v862
    %890 = vmatprep.subr.bf16.mxu0 0
    %891 = vmatpush2.bf16.msra.mxu0 0
    %892 = vmatprep.subr.bf16.mxu0 0
    %893 = vmatpush2.bf16.msra.mxu0 0
    %894 = vmatprep.subr.bf16.mxu0 0
    %895 = vmatpush2.bf16.msra.mxu0 0
    %896 = vmatprep.subr.bf16.mxu0 0
    %897 = vmatpush2.bf16.msra.mxu0 0
    %898 = vmatprep.subr.bf16.mxu0 0
    %899 = vmatpush2.bf16.msra.mxu0 0
    %900 = vmatprep.subr.bf16.mxu0 0
    %901 = vmatpush2.bf16.msra.mxu0 0
    %902 = vmatprep.subr.bf16.mxu0 0
    %903 = vmatpush2.bf16.msra.mxu0 0
    %904 = vmatprep.subr.bf16.mxu0 0
    %905 = vmatpush2.bf16.msra.mxu0 0
    %906 = vmatprep.mubr.bf16.mxu0 0
    %907 = vmatmul.mubr.bf16.gmra.mxu0 %v872
    %v908 = vpop.f32.mrf.mxu0
    %v909 = vadd.f32 %v844, %v908
    %v910 = vpop.f32.mrf.mxu0
    %v911 = vpop.f32.mrf.mxu0
    %v912 = vadd.f32 %v844, %v911
    %v913 = vpop.f32.mrf.mxu0
    %914 = vdwg.mxu0
    %v915 = vadd.f32 %v909, %v822
    %v916 = vadd.f32 %v912, %v826
    %v917 = vmax.f32 %v915, 0.0
    %v918 = vmax.f32 %v916, 0.0
    %v919 = vpack.c.bf16 %v918, %v917
    %v920 = vld [vmem:[#allocation8 + $0x4] sm:$0xf]
    %v921 = vld [vmem:[#allocation8 + $0x14] sm:$0xf]
    %v922 = vld [vmem:[#allocation8 + $0x24] sm:$0xf]
    %v923 = vld [vmem:[#allocation8 + $0x34] sm:$0xf]
    %v924 = vld [vmem:[#allocation8 + $0x44] sm:$0xf]
    %v925 = vld [vmem:[#allocation8 + $0x54] sm:$0xf]
    %v926 = vld [vmem:[#allocation8 + $0x64] sm:$0xf]
    %v927 = vld [vmem:[#allocation8 + $0x74] sm:$0xf]
    %v928 = vld [vmem:[#allocation11 + $0xd] sm:$0x1]
    %v930 = vlaneseq
    %v931 = vshrl.u32 %v930, 7
    %v932 = vsub.s32 0, %v931
    %v933 = vrot.slane %v928, %v932
    %v943 = vunpack.c.l.b16 %v920
    %v944 = vunpack.c.l.b16 %v921
    %v945 = vunpack.c.l.b16 %v922
    %v946 = vunpack.c.l.b16 %v923
    %v947 = vunpack.c.l.b16 %v924
    %v948 = vunpack.c.l.b16 %v925
    %v949 = vunpack.c.l.b16 %v926
    %v950 = vunpack.c.l.b16 %v927
    %v951 = vpack.c.b16 %v944, %v943
    %v952 = vpack.c.b16 %v946, %v945
    %v953 = vpack.c.b16 %v948, %v947
    %v954 = vpack.c.b16 %v950, %v949
    %v960 = vsel %vm870, %v919, 0
    %962 = vmatprep.subr.bf16.mxu0 0
    %963 = vmatpush1.bf16.msra.mxu0 0
    %964 = vmatprep.subr.bf16.mxu0 0
    %965 = vmatpush1.bf16.msra.mxu0 0
    %966 = vmatprep.subr.bf16.mxu0 0
    %967 = vmatpush1.bf16.msra.mxu0 0
    %968 = vmatprep.subr.bf16.mxu0 0
    %969 = vmatpush1.bf16.msra.mxu0 0
    %970 = vmatprep.subr.bf16.mxu0 0
    %971 = vmatpush1.bf16.msra.mxu0 %v954
    %972 = vmatprep.subr.bf16.mxu0 0
    %973 = vmatpush1.bf16.msra.mxu0 %v953
    %974 = vmatprep.subr.bf16.mxu0 0
    %975 = vmatpush1.bf16.msra.mxu0 %v952
    %976 = vmatprep.subr.bf16.mxu0 0
    %977 = vmatpush1.bf16.msra.mxu0 %v951
    %978 = vmatprep.subr.bf16.mxu0 0
    %979 = vmatpush2.bf16.msra.mxu0 0
    %980 = vmatprep.subr.bf16.mxu0 0
    %981 = vmatpush2.bf16.msra.mxu0 0
    %982 = vmatprep.subr.bf16.mxu0 0
    %983 = vmatpush2.bf16.msra.mxu0 0
    %984 = vmatprep.subr.bf16.mxu0 0
    %985 = vmatpush2.bf16.msra.mxu0 0
    %986 = vmatprep.subr.bf16.mxu0 0
    %987 = vmatpush2.bf16.msra.mxu0 0
    %988 = vmatprep.subr.bf16.mxu0 0
    %989 = vmatpush2.bf16.msra.mxu0 0
    %990 = vmatprep.subr.bf16.mxu0 0
    %991 = vmatpush2.bf16.msra.mxu0 0
    %992 = vmatprep.subr.bf16.mxu0 0
    %993 = vmatpush2.bf16.msra.mxu0 0
    %994 = vmatprep.mubr.bf16.mxu0 0
    %995 = vmatmul.mubr.bf16.gmra.mxu0 %v960
    %v996 = vpop.f32.mrf.mxu0
    %v997 = vadd.f32 %v933, %v996
    %v998 = vpop.f32.mrf.mxu0
    %v999 = vpop.f32.mrf.mxu0
    %v1000 = vadd.f32 %v933, %v999
    %v1001 = vpop.f32.mrf.mxu0
    %1002 = vdwg.mxu0
    %v1003 = vmax.f32 %v997, 0.0
    %v1004 = vmax.f32 %v1000, 0.0
    %v1005 = vpack.c.bf16 %v1004, %v1003
    %v1006 = vld [vmem:[#allocation8 + $0x8] sm:$0xf]
    %v1007 = vld [vmem:[#allocation8 + $0x18] sm:$0xf]
    %v1008 = vld [vmem:[#allocation8 + $0x28] sm:$0xf]
    %v1009 = vld [vmem:[#allocation8 + $0x38] sm:$0xf]
    %v1010 = vld [vmem:[#allocation8 + $0x48] sm:$0xf]
    %v1011 = vld [vmem:[#allocation8 + $0x58] sm:$0xf]
    %v1012 = vld [vmem:[#allocation8 + $0x68] sm:$0xf]
    %v1013 = vld [vmem:[#allocation8 + $0x78] sm:$0xf]
    %v1014 = vld [vmem:[#allocation11 + $0xe] sm:$0x1]
    %v1016 = vlaneseq
    %v1017 = vshrl.u32 %v1016, 7
    %v1018 = vsub.s32 0, %v1017
    %v1019 = vrot.slane %v1014, %v1018
    %v1029 = vunpack.c.l.b16 %v1006
    %v1030 = vunpack.c.l.b16 %v1007
    %v1031 = vunpack.c.l.b16 %v1008
    %v1032 = vunpack.c.l.b16 %v1009
    %v1033 = vunpack.c.l.b16 %v1010
    %v1034 = vunpack.c.l.b16 %v1011
    %v1035 = vunpack.c.l.b16 %v1012
    %v1036 = vunpack.c.l.b16 %v1013
    %v1037 = vpack.c.b16 %v1030, %v1029
    %v1038 = vpack.c.b16 %v1032, %v1031
    %v1039 = vpack.c.b16 %v1034, %v1033
    %v1040 = vpack.c.b16 %v1036, %v1035
    %v1046 = vsel %vm870, %v1005, 0
    %1048 = vmatprep.subr.bf16.mxu0 0
    %1049 = vmatpush1.bf16.msra.mxu0 0
    %1050 = vmatprep.subr.bf16.mxu0 0
    %1051 = vmatpush1.bf16.msra.mxu0 0
    %1052 = vmatprep.subr.bf16.mxu0 0
    %1053 = vmatpush1.bf16.msra.mxu0 0
    %1054 = vmatprep.subr.bf16.mxu0 0
    %1055 = vmatpush1.bf16.msra.mxu0 0
    %1056 = vmatprep.subr.bf16.mxu0 0
    %1057 = vmatpush1.bf16.msra.mxu0 %v1040
    %1058 = vmatprep.subr.bf16.mxu0 0
    %1059 = vmatpush1.bf16.msra.mxu0 %v1039
    %1060 = vmatprep.subr.bf16.mxu0 0
    %1061 = vmatpush1.bf16.msra.mxu0 %v1038
    %1062 = vmatprep.subr.bf16.mxu0 0
    %1063 = vmatpush1.bf16.msra.mxu0 %v1037
    %1064 = vmatprep.subr.bf16.mxu0 0
    %1065 = vmatpush2.bf16.msra.mxu0 0
    %1066 = vmatprep.subr.bf16.mxu0 0
    %1067 = vmatpush2.bf16.msra.mxu0 0
    %1068 = vmatprep.subr.bf16.mxu0 0
    %1069 = vmatpush2.bf16.msra.mxu0 0
    %1070 = vmatprep.subr.bf16.mxu0 0
    %1071 = vmatpush2.bf16.msra.mxu0 0
    %1072 = vmatprep.subr.bf16.mxu0 0
    %1073 = vmatpush2.bf16.msra.mxu0 0
    %1074 = vmatprep.subr.bf16.mxu0 0
    %1075 = vmatpush2.bf16.msra.mxu0 0
    %1076 = vmatprep.subr.bf16.mxu0 0
    %1077 = vmatpush2.bf16.msra.mxu0 0
    %1078 = vmatprep.subr.bf16.mxu0 0
    %1079 = vmatpush2.bf16.msra.mxu0 0
    %1080 = vmatprep.mubr.bf16.mxu0 0
    %1081 = vmatmul.mubr.bf16.gmra.mxu0 %v1046
    %v1082 = vpop.f32.mrf.mxu0
    %v1083 = vadd.f32 %v1019, %v1082
    %v1084 = vpop.f32.mrf.mxu0
    %v1085 = vpop.f32.mrf.mxu0
    %v1086 = vadd.f32 %v1019, %v1085
    %v1087 = vpop.f32.mrf.mxu0
    %1088 = vdwg.mxu0
    %v1089 = vadd.f32 %v1083, %v917
    %v1090 = vadd.f32 %v1086, %v918
    %v1091 = vmax.f32 %v1089, 0.0
    %v1092 = vmax.f32 %v1090, 0.0
    %1093 = vst [vmem:[#allocation14] sm:$0xff] %v1091
    %1094 = vst [vmem:[#allocation14 + $0x8] sm:$0xff] %v1092
    %v1095 = vpack.c.bf16 %v1092, %v1091
    %v1096 = vld [vmem:[#allocation8 + $0xc] sm:$0xf]
    %v1097 = vld [vmem:[#allocation8 + $0x1c] sm:$0xf]
    %v1098 = vld [vmem:[#allocation8 + $0x2c] sm:$0xf]
    %v1099 = vld [vmem:[#allocation8 + $0x3c] sm:$0xf]
    %v1100 = vld [vmem:[#allocation8 + $0x4c] sm:$0xf]
    %v1101 = vld [vmem:[#allocation8 + $0x5c] sm:$0xf]
    %v1102 = vld [vmem:[#allocation8 + $0x6c] sm:$0xf]
    %v1103 = vld [vmem:[#allocation8 + $0x7c] sm:$0xf]
    %v1104 = vld [vmem:[#allocation11 + $0xf] sm:$0x1]
    %v1106 = vlaneseq
    %v1107 = vshrl.u32 %v1106, 7
    %v1108 = vsub.s32 0, %v1107
    %v1109 = vrot.slane %v1104, %v1108
    %v1119 = vunpack.c.l.b16 %v1096
    %v1120 = vunpack.c.l.b16 %v1097
    %v1121 = vunpack.c.l.b16 %v1098
    %v1122 = vunpack.c.l.b16 %v1099
    %v1123 = vunpack.c.l.b16 %v1100
    %v1124 = vunpack.c.l.b16 %v1101
    %v1125 = vunpack.c.l.b16 %v1102
    %v1126 = vunpack.c.l.b16 %v1103
    %v1127 = vpack.c.b16 %v1120, %v1119
    %v1128 = vpack.c.b16 %v1122, %v1121
    %v1129 = vpack.c.b16 %v1124, %v1123
    %v1130 = vpack.c.b16 %v1126, %v1125
    %v1136 = vsel %vm870, %v1095, 0
    %1138 = vmatprep.subr.bf16.mxu0 0
    %1139 = vmatpush1.bf16.msra.mxu0 0
    %1140 = vmatprep.subr.bf16.mxu0 0
    %1141 = vmatpush1.bf16.msra.mxu0 0
    %1142 = vmatprep.subr.bf16.mxu0 0
    %1143 = vmatpush1.bf16.msra.mxu0 0
    %1144 = vmatprep.subr.bf16.mxu0 0
    %1145 = vmatpush1.bf16.msra.mxu0 0
    %1146 = vmatprep.subr.bf16.mxu0 0
    %1147 = vmatpush1.bf16.msra.mxu0 %v1130
    %1148 = vmatprep.subr.bf16.mxu0 0
    %1149 = vmatpush1.bf16.msra.mxu0 %v1129
    %1150 = vmatprep.subr.bf16.mxu0 0
    %1151 = vmatpush1.bf16.msra.mxu0 %v1128
    %1152 = vmatprep.subr.bf16.mxu0 0
    %1153 = vmatpush1.bf16.msra.mxu0 %v1127
    %1154 = vmatprep.subr.bf16.mxu0 0
    %1155 = vmatpush2.bf16.msra.mxu0 0
    %1156 = vmatprep.subr.bf16.mxu0 0
    %1157 = vmatpush2.bf16.msra.mxu0 0
    %1158 = vmatprep.subr.bf16.mxu0 0
    %1159 = vmatpush2.bf16.msra.mxu0 0
    %1160 = vmatprep.subr.bf16.mxu0 0
    %1161 = vmatpush2.bf16.msra.mxu0 0
    %1162 = vmatprep.subr.bf16.mxu0 0
    %1163 = vmatpush2.bf16.msra.mxu0 0
    %1164 = vmatprep.subr.bf16.mxu0 0
    %1165 = vmatpush2.bf16.msra.mxu0 0
    %1166 = vmatprep.subr.bf16.mxu0 0
    %1167 = vmatpush2.bf16.msra.mxu0 0
    %1168 = vmatprep.subr.bf16.mxu0 0
    %1169 = vmatpush2.bf16.msra.mxu0 0
    %1170 = vmatprep.mubr.bf16.mxu0 0
    %1171 = vmatmul.mubr.bf16.gmra.mxu0 %v1136
    %v1172 = vpop.f32.mrf.mxu0
    %v1173 = vadd.f32 %v1109, %v1172
    %v1174 = vpop.f32.mrf.mxu0
    %v1175 = vpop.f32.mrf.mxu0
    %v1176 = vadd.f32 %v1109, %v1175
    %v1177 = vpop.f32.mrf.mxu0
    %1178 = vdwg.mxu0
    %1179 = vst [vmem:[#allocation13] sm:$0xff] %v1173
    %1180 = vst [vmem:[#allocation13 + $0x8] sm:$0xff] %v1176
    %v1181 = vpack.c.bf16 %v111, %v110
    %v1182 = vld [vmem:[#allocation10] sm:$0xff]
    %v1183 = vld [vmem:[#allocation10 + $0x8] sm:$0xff]
    %v1184 = vld [vmem:[#allocation10 + $0x10] sm:$0xff]
    %v1185 = vld [vmem:[#allocation10 + $0x18] sm:$0xff]
    %v1186 = vld [vmem:[#allocation10 + $0x20] sm:$0xff]
    %v1187 = vld [vmem:[#allocation10 + $0x28] sm:$0xff]
    %v1188 = vld [vmem:[#allocation10 + $0x30] sm:$0xff]
    %v1189 = vld [vmem:[#allocation10 + $0x38] sm:$0xff]
    %v1190 = vld [vmem:[#allocation10 + $0x40] sm:$0xff]
    %v1191 = vld [vmem:[#allocation10 + $0x48] sm:$0xff]
    %v1192 = vld [vmem:[#allocation10 + $0x50] sm:$0xff]
    %v1193 = vld [vmem:[#allocation10 + $0x58] sm:$0xff]
    %v1194 = vld [vmem:[#allocation10 + $0x60] sm:$0xff]
    %v1195 = vld [vmem:[#allocation10 + $0x68] sm:$0xff]
    %v1196 = vld [vmem:[#allocation10 + $0x70] sm:$0xff]
    %v1197 = vld [vmem:[#allocation10 + $0x78] sm:$0xff]
    %v1198 = vld [vmem:[#allocation11] sm:$0x3]
    %v1200 = vlaneseq
    %v1201 = vshrl.u32 %v1200, 7
    %v1202 = vsub.s32 0, %v1201
    %v1203 = vrot.slane %v1198, %v1202
    %v1204 = vlaneseq
    %v1205 = vshrl.u32 %v1204, 7
    %v1206 = vsub.s32 1, %v1205
    %v1207 = vrot.slane %v1198, %v1206
    %v1226 = vunpack.c.l.b16 %v1182
    %v1227 = vunpack.c.h.b16 %v1182
    %v1228 = vunpack.c.l.b16 %v1183
    %v1229 = vunpack.c.h.b16 %v1183
    %v1230 = vunpack.c.l.b16 %v1184
    %v1231 = vunpack.c.h.b16 %v1184
    %v1232 = vunpack.c.l.b16 %v1185
    %v1233 = vunpack.c.h.b16 %v1185
    %v1234 = vunpack.c.l.b16 %v1186
    %v1235 = vunpack.c.h.b16 %v1186
    %v1236 = vunpack.c.l.b16 %v1187
    %v1237 = vunpack.c.h.b16 %v1187
    %v1238 = vunpack.c.l.b16 %v1188
    %v1239 = vunpack.c.h.b16 %v1188
    %v1240 = vunpack.c.l.b16 %v1189
    %v1241 = vunpack.c.h.b16 %v1189
    %v1242 = vunpack.c.l.b16 %v1190
    %v1243 = vunpack.c.h.b16 %v1190
    %v1244 = vunpack.c.l.b16 %v1191
    %v1245 = vunpack.c.h.b16 %v1191
    %v1246 = vunpack.c.l.b16 %v1192
    %v1247 = vunpack.c.h.b16 %v1192
    %v1248 = vunpack.c.l.b16 %v1193
    %v1249 = vunpack.c.h.b16 %v1193
    %v1250 = vunpack.c.l.b16 %v1194
    %v1251 = vunpack.c.h.b16 %v1194
    %v1252 = vunpack.c.l.b16 %v1195
    %v1253 = vunpack.c.h.b16 %v1195
    %v1254 = vunpack.c.l.b16 %v1196
    %v1255 = vunpack.c.h.b16 %v1196
    %v1256 = vunpack.c.l.b16 %v1197
    %v1257 = vunpack.c.h.b16 %v1197
    %v1258 = vpack.c.b16 %v1228, %v1226
    %v1259 = vpack.c.b16 %v1229, %v1227
    %v1260 = vpack.c.b16 %v1232, %v1230
    %v1261 = vpack.c.b16 %v1233, %v1231
    %v1262 = vpack.c.b16 %v1236, %v1234
    %v1263 = vpack.c.b16 %v1237, %v1235
    %v1264 = vpack.c.b16 %v1240, %v1238
    %v1265 = vpack.c.b16 %v1241, %v1239
    %v1266 = vpack.c.b16 %v1244, %v1242
    %v1267 = vpack.c.b16 %v1245, %v1243
    %v1268 = vpack.c.b16 %v1248, %v1246
    %v1269 = vpack.c.b16 %v1249, %v1247
    %v1270 = vpack.c.b16 %v1252, %v1250
    %v1271 = vpack.c.b16 %v1253, %v1251
    %v1272 = vpack.c.b16 %v1256, %v1254
    %v1273 = vpack.c.b16 %v1257, %v1255
    %1290 = vmatprep.subr.bf16.mxu0 %v1273
    %1291 = vmatpush1.bf16.msra.mxu0 %v1272
    %1292 = vmatprep.subr.bf16.mxu0 %v1271
    %1293 = vmatpush1.bf16.msra.mxu0 %v1270
    %1294 = vmatprep.subr.bf16.mxu0 %v1269
    %1295 = vmatpush1.bf16.msra.mxu0 %v1268
    %1296 = vmatprep.subr.bf16.mxu0 %v1267
    %1297 = vmatpush1.bf16.msra.mxu0 %v1266
    %1298 = vmatprep.subr.bf16.mxu0 %v1265
    %1299 = vmatpush1.bf16.msra.mxu0 %v1264
    %1300 = vmatprep.subr.bf16.mxu0 %v1263
    %1301 = vmatpush1.bf16.msra.mxu0 %v1262
    %1302 = vmatprep.subr.bf16.mxu0 %v1261
    %1303 = vmatpush1.bf16.msra.mxu0 %v1260
    %1304 = vmatprep.subr.bf16.mxu0 %v1259
    %1305 = vmatpush1.bf16.msra.mxu0 %v1258
    %1306 = vmatprep.subr.bf16.mxu0 0
    %1307 = vmatpush2.bf16.msra.mxu0 0
    %1308 = vmatprep.subr.bf16.mxu0 0
    %1309 = vmatpush2.bf16.msra.mxu0 0
    %1310 = vmatprep.subr.bf16.mxu0 0
    %1311 = vmatpush2.bf16.msra.mxu0 0
    %1312 = vmatprep.subr.bf16.mxu0 0
    %1313 = vmatpush2.bf16.msra.mxu0 0
    %1314 = vmatprep.subr.bf16.mxu0 0
    %1315 = vmatpush2.bf16.msra.mxu0 0
    %1316 = vmatprep.subr.bf16.mxu0 0
    %1317 = vmatpush2.bf16.msra.mxu0 0
    %1318 = vmatprep.subr.bf16.mxu0 0
    %1319 = vmatpush2.bf16.msra.mxu0 0
    %1320 = vmatprep.subr.bf16.mxu0 0
    %1321 = vmatpush2.bf16.msra.mxu0 0
    %1322 = vmatprep.mubr.bf16.mxu0 0
    %1323 = vmatmul.mubr.bf16.gmra.mxu0 %v1181
    %v1324 = vpop.f32.mrf.mxu0
    %v1325 = vadd.f32 %v1203, %v1324
    %v1326 = vpop.f32.mrf.mxu0
    %v1327 = vadd.f32 %v1207, %v1326
    %v1328 = vpop.f32.mrf.mxu0
    %v1329 = vadd.f32 %v1203, %v1328
    %v1330 = vpop.f32.mrf.mxu0
    %v1331 = vadd.f32 %v1207, %v1330
    %1332 = vdwg.mxu0
    %v1333 = vmax.f32 %v1325, 0.0
    %v1334 = vmax.f32 %v1329, 0.0
    %v1335 = vpack.c.bf16 %v1334, %v1333
    %v1336 = vld [vmem:[#allocation5] sm:$0xf]
    %v1337 = vld [vmem:[#allocation5 + $0x14] sm:$0xf]
    %v1338 = vld [vmem:[#allocation11 + $0x2] sm:$0x1]
    %v1340 = vlaneseq
    %v1341 = vshrl.u32 %v1340, 7
    %v1342 = vsub.s32 0, %v1341
    %v1343 = vrot.slane %v1338, %v1342
    %v1347 = vunpack.c.l.b16 %v1336
    %v1348 = vunpack.c.l.b16 %v1337
    %v1349 = vpack.c.b16 %v1348, %v1347
    %v1352 = vsel %vm282, %v1335, 0
    %1354 = vmatprep.subr.bf16.mxu0 0
    %1355 = vmatpush1.bf16.msra.mxu0 0
    %1356 = vmatprep.subr.bf16.mxu0 0
    %1357 = vmatpush1.bf16.msra.mxu0 0
    %1358 = vmatprep.subr.bf16.mxu0 0
    %1359 = vmatpush1.bf16.msra.mxu0 0
    %1360 = vmatprep.subr.bf16.mxu0 0
    %1361 = vmatpush1.bf16.msra.mxu0 0
    %1362 = vmatprep.subr.bf16.mxu0 0
    %1363 = vmatpush1.bf16.msra.mxu0 0
    %1364 = vmatprep.subr.bf16.mxu0 0
    %1365 = vmatpush1.bf16.msra.mxu0 0
    %1366 = vmatprep.subr.bf16.mxu0 0
    %1367 = vmatpush1.bf16.msra.mxu0 0
    %1368 = vmatprep.subr.bf16.mxu0 0
    %1369 = vmatpush1.bf16.msra.mxu0 %v1349
    %1370 = vmatprep.subr.bf16.mxu0 0
    %1371 = vmatpush2.bf16.msra.mxu0 0
    %1372 = vmatprep.subr.bf16.mxu0 0
    %1373 = vmatpush2.bf16.msra.mxu0 0
    %1374 = vmatprep.subr.bf16.mxu0 0
    %1375 = vmatpush2.bf16.msra.mxu0 0
    %1376 = vmatprep.subr.bf16.mxu0 0
    %1377 = vmatpush2.bf16.msra.mxu0 0
    %1378 = vmatprep.subr.bf16.mxu0 0
    %1379 = vmatpush2.bf16.msra.mxu0 0
    %1380 = vmatprep.subr.bf16.mxu0 0
    %1381 = vmatpush2.bf16.msra.mxu0 0
    %1382 = vmatprep.subr.bf16.mxu0 0
    %1383 = vmatpush2.bf16.msra.mxu0 0
    %1384 = vmatprep.subr.bf16.mxu0 0
    %1385 = vmatpush2.bf16.msra.mxu0 0
    %1386 = vmatprep.mubr.bf16.mxu0 0
    %1387 = vmatmul.mubr.bf16.gmra.mxu0 %v1352
    %v1388 = vpop.f32.mrf.mxu0
    %v1389 = vadd.f32 %v1343, %v1388
    %v1390 = vpop.f32.mrf.mxu0
    %v1391 = vpop.f32.mrf.mxu0
    %v1392 = vadd.f32 %v1343, %v1391
    %v1393 = vpop.f32.mrf.mxu0
    %1394 = vdwg.mxu0
    %v1395 = vadd.f32 %v1389, %v1327
    %v1396 = vadd.f32 %v1392, %v1331
    %v1397 = vmax.f32 %v1395, 0.0
    %v1398 = vmax.f32 %v1396, 0.0
    %v1399 = vpack.c.bf16 %v1398, %v1397
    %v1400 = vld [vmem:[#allocation5 + $0x4] sm:$0xf]
    %v1401 = vld [vmem:[#allocation5 + $0x18] sm:$0xf]
    %v1402 = vld [vmem:[#allocation11 + $0x3] sm:$0x1]
    %v1404 = vlaneseq
    %v1405 = vshrl.u32 %v1404, 7
    %v1406 = vsub.s32 0, %v1405
    %v1407 = vrot.slane %v1402, %v1406
    %v1411 = vunpack.c.l.b16 %v1400
    %v1412 = vunpack.c.l.b16 %v1401
    %v1413 = vpack.c.b16 %v1412, %v1411
    %v1416 = vsel %vm282, %v1399, 0
    %1418 = vmatprep.subr.bf16.mxu0 0
    %1419 = vmatpush1.bf16.msra.mxu0 0
    %1420 = vmatprep.subr.bf16.mxu0 0
    %1421 = vmatpush1.bf16.msra.mxu0 0
    %1422 = vmatprep.subr.bf16.mxu0 0
    %1423 = vmatpush1.bf16.msra.mxu0 0
    %1424 = vmatprep.subr.bf16.mxu0 0
    %1425 = vmatpush1.bf16.msra.mxu0 0
    %1426 = vmatprep.subr.bf16.mxu0 0
    %1427 = vmatpush1.bf16.msra.mxu0 0
    %1428 = vmatprep.subr.bf16.mxu0 0
    %1429 = vmatpush1.bf16.msra.mxu0 0
    %1430 = vmatprep.subr.bf16.mxu0 0
    %1431 = vmatpush1.bf16.msra.mxu0 0
    %1432 = vmatprep.subr.bf16.mxu0 0
    %1433 = vmatpush1.bf16.msra.mxu0 %v1413
    %1434 = vmatprep.subr.bf16.mxu0 0
    %1435 = vmatpush2.bf16.msra.mxu0 0
    %1436 = vmatprep.subr.bf16.mxu0 0
    %1437 = vmatpush2.bf16.msra.mxu0 0
    %1438 = vmatprep.subr.bf16.mxu0 0
    %1439 = vmatpush2.bf16.msra.mxu0 0
    %1440 = vmatprep.subr.bf16.mxu0 0
    %1441 = vmatpush2.bf16.msra.mxu0 0
    %1442 = vmatprep.subr.bf16.mxu0 0
    %1443 = vmatpush2.bf16.msra.mxu0 0
    %1444 = vmatprep.subr.bf16.mxu0 0
    %1445 = vmatpush2.bf16.msra.mxu0 0
    %1446 = vmatprep.subr.bf16.mxu0 0
    %1447 = vmatpush2.bf16.msra.mxu0 0
    %1448 = vmatprep.subr.bf16.mxu0 0
    %1449 = vmatpush2.bf16.msra.mxu0 0
    %1450 = vmatprep.mubr.bf16.mxu0 0
    %1451 = vmatmul.mubr.bf16.gmra.mxu0 %v1416
    %v1452 = vpop.f32.mrf.mxu0
    %v1453 = vadd.f32 %v1407, %v1452
    %v1454 = vpop.f32.mrf.mxu0
    %v1455 = vpop.f32.mrf.mxu0
    %v1456 = vadd.f32 %v1407, %v1455
    %v1457 = vpop.f32.mrf.mxu0
    %1458 = vdwg.mxu0
    %v1459 = vmax.f32 %v1453, 0.0
    %v1460 = vmax.f32 %v1456, 0.0
    %v1461 = vpack.c.bf16 %v1460, %v1459
    %v1462 = vld [vmem:[#allocation5 + $0x8] sm:$0xf]
    %v1463 = vld [vmem:[#allocation5 + $0x1c] sm:$0xf]
    %v1464 = vld [vmem:[#allocation11 + $0x4] sm:$0x1]
    %v1466 = vlaneseq
    %v1467 = vshrl.u32 %v1466, 7
    %v1468 = vsub.s32 0, %v1467
    %v1469 = vrot.slane %v1464, %v1468
    %v1473 = vunpack.c.l.b16 %v1462
    %v1474 = vunpack.c.l.b16 %v1463
    %v1475 = vpack.c.b16 %v1474, %v1473
    %v1478 = vsel %vm282, %v1461, 0
    %1480 = vmatprep.subr.bf16.mxu0 0
    %1481 = vmatpush1.bf16.msra.mxu0 0
    %1482 = vmatprep.subr.bf16.mxu0 0
    %1483 = vmatpush1.bf16.msra.mxu0 0
    %1484 = vmatprep.subr.bf16.mxu0 0
    %1485 = vmatpush1.bf16.msra.mxu0 0
    %1486 = vmatprep.subr.bf16.mxu0 0
    %1487 = vmatpush1.bf16.msra.mxu0 0
    %1488 = vmatprep.subr.bf16.mxu0 0
    %1489 = vmatpush1.bf16.msra.mxu0 0
    %1490 = vmatprep.subr.bf16.mxu0 0
    %1491 = vmatpush1.bf16.msra.mxu0 0
    %1492 = vmatprep.subr.bf16.mxu0 0
    %1493 = vmatpush1.bf16.msra.mxu0 0
    %1494 = vmatprep.subr.bf16.mxu0 0
    %1495 = vmatpush1.bf16.msra.mxu0 %v1475
    %1496 = vmatprep.subr.bf16.mxu0 0
    %1497 = vmatpush2.bf16.msra.mxu0 0
    %1498 = vmatprep.subr.bf16.mxu0 0
    %1499 = vmatpush2.bf16.msra.mxu0 0
    %1500 = vmatprep.subr.bf16.mxu0 0
    %1501 = vmatpush2.bf16.msra.mxu0 0
    %1502 = vmatprep.subr.bf16.mxu0 0
    %1503 = vmatpush2.bf16.msra.mxu0 0
    %1504 = vmatprep.subr.bf16.mxu0 0
    %1505 = vmatpush2.bf16.msra.mxu0 0
    %1506 = vmatprep.subr.bf16.mxu0 0
    %1507 = vmatpush2.bf16.msra.mxu0 0
    %1508 = vmatprep.subr.bf16.mxu0 0
    %1509 = vmatpush2.bf16.msra.mxu0 0
    %1510 = vmatprep.subr.bf16.mxu0 0
    %1511 = vmatpush2.bf16.msra.mxu0 0
    %1512 = vmatprep.mubr.bf16.mxu0 0
    %1513 = vmatmul.mubr.bf16.gmra.mxu0 %v1478
    %v1514 = vpop.f32.mrf.mxu0
    %v1515 = vadd.f32 %v1469, %v1514
    %v1516 = vpop.f32.mrf.mxu0
    %v1517 = vpop.f32.mrf.mxu0
    %v1518 = vadd.f32 %v1469, %v1517
    %v1519 = vpop.f32.mrf.mxu0
    %1520 = vdwg.mxu0
    %v1521 = vadd.f32 %v1515, %v1397
    %v1522 = vadd.f32 %v1518, %v1398
    %v1523 = vmax.f32 %v1521, 0.0
    %v1524 = vmax.f32 %v1522, 0.0
    %v1525 = vpack.c.bf16 %v1524, %v1523
    %v1526 = vld [vmem:[#allocation5 + $0xc] sm:$0xff]
    %v1527 = vld [vmem:[#allocation5 + $0x20] sm:$0xff]
    %v1528 = vld [vmem:[#allocation11 + $0x5] sm:$0x3]
    %v1530 = vlaneseq
    %v1531 = vshrl.u32 %v1530, 7
    %v1532 = vsub.s32 0, %v1531
    %v1533 = vrot.slane %v1528, %v1532
    %v1534 = vlaneseq
    %v1535 = vshrl.u32 %v1534, 7
    %v1536 = vsub.s32 1, %v1535
    %v1537 = vrot.slane %v1528, %v1536
    %v1542 = vunpack.c.l.b16 %v1526
    %v1543 = vunpack.c.h.b16 %v1526
    %v1544 = vunpack.c.l.b16 %v1527
    %v1545 = vunpack.c.h.b16 %v1527
    %v1546 = vpack.c.b16 %v1544, %v1542
    %v1547 = vpack.c.b16 %v1545, %v1543
    %v1551 = vsel %vm282, %v1525, 0
    %1553 = vmatprep.subr.bf16.mxu0 0
    %1554 = vmatpush1.bf16.msra.mxu0 0
    %1555 = vmatprep.subr.bf16.mxu0 0
    %1556 = vmatpush1.bf16.msra.mxu0 0
    %1557 = vmatprep.subr.bf16.mxu0 0
    %1558 = vmatpush1.bf16.msra.mxu0 0
    %1559 = vmatprep.subr.bf16.mxu0 0
    %1560 = vmatpush1.bf16.msra.mxu0 0
    %1561 = vmatprep.subr.bf16.mxu0 0
    %1562 = vmatpush1.bf16.msra.mxu0 0
    %1563 = vmatprep.subr.bf16.mxu0 0
    %1564 = vmatpush1.bf16.msra.mxu0 0
    %1565 = vmatprep.subr.bf16.mxu0 0
    %1566 = vmatpush1.bf16.msra.mxu0 0
    %1567 = vmatprep.subr.bf16.mxu0 %v1547
    %1568 = vmatpush1.bf16.msra.mxu0 %v1546
    %1569 = vmatprep.subr.bf16.mxu0 0
    %1570 = vmatpush2.bf16.msra.mxu0 0
    %1571 = vmatprep.subr.bf16.mxu0 0
    %1572 = vmatpush2.bf16.msra.mxu0 0
    %1573 = vmatprep.subr.bf16.mxu0 0
    %1574 = vmatpush2.bf16.msra.mxu0 0
    %1575 = vmatprep.subr.bf16.mxu0 0
    %1576 = vmatpush2.bf16.msra.mxu0 0
    %1577 = vmatprep.subr.bf16.mxu0 0
    %1578 = vmatpush2.bf16.msra.mxu0 0
    %1579 = vmatprep.subr.bf16.mxu0 0
    %1580 = vmatpush2.bf16.msra.mxu0 0
    %1581 = vmatprep.subr.bf16.mxu0 0
    %1582 = vmatpush2.bf16.msra.mxu0 0
    %1583 = vmatprep.subr.bf16.mxu0 0
    %1584 = vmatpush2.bf16.msra.mxu0 0
    %1585 = vmatprep.mubr.bf16.mxu0 0
    %1586 = vmatmul.mubr.bf16.gmra.mxu0 %v1551
    %v1587 = vpop.f32.mrf.mxu0
    %v1588 = vadd.f32 %v1533, %v1587
    %v1589 = vpop.f32.mrf.mxu0
    %v1590 = vadd.f32 %v1537, %v1589
    %v1591 = vpop.f32.mrf.mxu0
    %v1592 = vadd.f32 %v1533, %v1591
    %v1593 = vpop.f32.mrf.mxu0
    %v1594 = vadd.f32 %v1537, %v1593
    %1595 = vdwg.mxu0
    %v1596 = vmax.f32 %v1588, 0.0
    %v1597 = vmax.f32 %v1592, 0.0
    %v1598 = vpack.c.bf16 %v1597, %v1596
    %v1599 = vld [vmem:[#allocation7] sm:$0xf]
    %v1600 = vld [vmem:[#allocation7 + $0x14] sm:$0xf]
    %v1601 = vld [vmem:[#allocation7 + $0x28] sm:$0xf]
    %v1602 = vld [vmem:[#allocation7 + $0x3c] sm:$0xf]
    %v1603 = vld [vmem:[#allocation11 + $0x7] sm:$0x1]
    %v1605 = vlaneseq
    %v1606 = vshrl.u32 %v1605, 7
    %v1607 = vsub.s32 0, %v1606
    %v1608 = vrot.slane %v1603, %v1607
    %v1614 = vunpack.c.l.b16 %v1599
    %v1615 = vunpack.c.l.b16 %v1600
    %v1616 = vunpack.c.l.b16 %v1601
    %v1617 = vunpack.c.l.b16 %v1602
    %v1618 = vpack.c.b16 %v1615, %v1614
    %v1619 = vpack.c.b16 %v1617, %v1616
    %v1623 = vsel %vm554, %v1598, 0
    %1625 = vmatprep.subr.bf16.mxu0 0
    %1626 = vmatpush1.bf16.msra.mxu0 0
    %1627 = vmatprep.subr.bf16.mxu0 0
    %1628 = vmatpush1.bf16.msra.mxu0 0
    %1629 = vmatprep.subr.bf16.mxu0 0
    %1630 = vmatpush1.bf16.msra.mxu0 0
    %1631 = vmatprep.subr.bf16.mxu0 0
    %1632 = vmatpush1.bf16.msra.mxu0 0
    %1633 = vmatprep.subr.bf16.mxu0 0
    %1634 = vmatpush1.bf16.msra.mxu0 0
    %1635 = vmatprep.subr.bf16.mxu0 0
    %1636 = vmatpush1.bf16.msra.mxu0 0
    %1637 = vmatprep.subr.bf16.mxu0 0
    %1638 = vmatpush1.bf16.msra.mxu0 %v1619
    %1639 = vmatprep.subr.bf16.mxu0 0
    %1640 = vmatpush1.bf16.msra.mxu0 %v1618
    %1641 = vmatprep.subr.bf16.mxu0 0
    %1642 = vmatpush2.bf16.msra.mxu0 0
    %1643 = vmatprep.subr.bf16.mxu0 0
    %1644 = vmatpush2.bf16.msra.mxu0 0
    %1645 = vmatprep.subr.bf16.mxu0 0
    %1646 = vmatpush2.bf16.msra.mxu0 0
    %1647 = vmatprep.subr.bf16.mxu0 0
    %1648 = vmatpush2.bf16.msra.mxu0 0
    %1649 = vmatprep.subr.bf16.mxu0 0
    %1650 = vmatpush2.bf16.msra.mxu0 0
    %1651 = vmatprep.subr.bf16.mxu0 0
    %1652 = vmatpush2.bf16.msra.mxu0 0
    %1653 = vmatprep.subr.bf16.mxu0 0
    %1654 = vmatpush2.bf16.msra.mxu0 0
    %1655 = vmatprep.subr.bf16.mxu0 0
    %1656 = vmatpush2.bf16.msra.mxu0 0
    %1657 = vmatprep.mubr.bf16.mxu0 0
    %1658 = vmatmul.mubr.bf16.gmra.mxu0 %v1623
    %v1659 = vpop.f32.mrf.mxu0
    %v1660 = vadd.f32 %v1608, %v1659
    %v1661 = vpop.f32.mrf.mxu0
    %v1662 = vpop.f32.mrf.mxu0
    %v1663 = vadd.f32 %v1608, %v1662
    %v1664 = vpop.f32.mrf.mxu0
    %1665 = vdwg.mxu0
    %v1666 = vadd.f32 %v1660, %v1590
    %v1667 = vadd.f32 %v1663, %v1594
    %v1668 = vmax.f32 %v1666, 0.0
    %v1669 = vmax.f32 %v1667, 0.0
    %v1670 = vpack.c.bf16 %v1669, %v1668
    %v1671 = vld [vmem:[#allocation7 + $0x4] sm:$0xf]
    %v1672 = vld [vmem:[#allocation7 + $0x18] sm:$0xf]
    %v1673 = vld [vmem:[#allocation7 + $0x2c] sm:$0xf]
    %v1674 = vld [vmem:[#allocation7 + $0x40] sm:$0xf]
    %v1675 = vld [vmem:[#allocation11 + $0x8] sm:$0x1]
    %v1677 = vlaneseq
    %v1678 = vshrl.u32 %v1677, 7
    %v1679 = vsub.s32 0, %v1678
    %v1680 = vrot.slane %v1675, %v1679
    %v1686 = vunpack.c.l.b16 %v1671
    %v1687 = vunpack.c.l.b16 %v1672
    %v1688 = vunpack.c.l.b16 %v1673
    %v1689 = vunpack.c.l.b16 %v1674
    %v1690 = vpack.c.b16 %v1687, %v1686
    %v1691 = vpack.c.b16 %v1689, %v1688
    %v1695 = vsel %vm554, %v1670, 0
    %1697 = vmatprep.subr.bf16.mxu0 0
    %1698 = vmatpush1.bf16.msra.mxu0 0
    %1699 = vmatprep.subr.bf16.mxu0 0
    %1700 = vmatpush1.bf16.msra.mxu0 0
    %1701 = vmatprep.subr.bf16.mxu0 0
    %1702 = vmatpush1.bf16.msra.mxu0 0
    %1703 = vmatprep.subr.bf16.mxu0 0
    %1704 = vmatpush1.bf16.msra.mxu0 0
    %1705 = vmatprep.subr.bf16.mxu0 0
    %1706 = vmatpush1.bf16.msra.mxu0 0
    %1707 = vmatprep.subr.bf16.mxu0 0
    %1708 = vmatpush1.bf16.msra.mxu0 0
    %1709 = vmatprep.subr.bf16.mxu0 0
    %1710 = vmatpush1.bf16.msra.mxu0 %v1691
    %1711 = vmatprep.subr.bf16.mxu0 0
    %1712 = vmatpush1.bf16.msra.mxu0 %v1690
    %1713 = vmatprep.subr.bf16.mxu0 0
    %1714 = vmatpush2.bf16.msra.mxu0 0
    %1715 = vmatprep.subr.bf16.mxu0 0
    %1716 = vmatpush2.bf16.msra.mxu0 0
    %1717 = vmatprep.subr.bf16.mxu0 0
    %1718 = vmatpush2.bf16.msra.mxu0 0
    %1719 = vmatprep.subr.bf16.mxu0 0
    %1720 = vmatpush2.bf16.msra.mxu0 0
    %1721 = vmatprep.subr.bf16.mxu0 0
    %1722 = vmatpush2.bf16.msra.mxu0 0
    %1723 = vmatprep.subr.bf16.mxu0 0
    %1724 = vmatpush2.bf16.msra.mxu0 0
    %1725 = vmatprep.subr.bf16.mxu0 0
    %1726 = vmatpush2.bf16.msra.mxu0 0
    %1727 = vmatprep.subr.bf16.mxu0 0
    %1728 = vmatpush2.bf16.msra.mxu0 0
    %1729 = vmatprep.mubr.bf16.mxu0 0
    %1730 = vmatmul.mubr.bf16.gmra.mxu0 %v1695
    %v1731 = vpop.f32.mrf.mxu0
    %v1732 = vadd.f32 %v1680, %v1731
    %v1733 = vpop.f32.mrf.mxu0
    %v1734 = vpop.f32.mrf.mxu0
    %v1735 = vadd.f32 %v1680, %v1734
    %v1736 = vpop.f32.mrf.mxu0
    %1737 = vdwg.mxu0
    %v1738 = vmax.f32 %v1732, 0.0
    %v1739 = vmax.f32 %v1735, 0.0
    %v1740 = vpack.c.bf16 %v1739, %v1738
    %v1741 = vld [vmem:[#allocation7 + $0x8] sm:$0xf]
    %v1742 = vld [vmem:[#allocation7 + $0x1c] sm:$0xf]
    %v1743 = vld [vmem:[#allocation7 + $0x30] sm:$0xf]
    %v1744 = vld [vmem:[#allocation7 + $0x44] sm:$0xf]
    %v1745 = vld [vmem:[#allocation11 + $0x9] sm:$0x1]
    %v1747 = vlaneseq
    %v1748 = vshrl.u32 %v1747, 7
    %v1749 = vsub.s32 0, %v1748
    %v1750 = vrot.slane %v1745, %v1749
    %v1756 = vunpack.c.l.b16 %v1741
    %v1757 = vunpack.c.l.b16 %v1742
    %v1758 = vunpack.c.l.b16 %v1743
    %v1759 = vunpack.c.l.b16 %v1744
    %v1760 = vpack.c.b16 %v1757, %v1756
    %v1761 = vpack.c.b16 %v1759, %v1758
    %v1765 = vsel %vm554, %v1740, 0
    %1767 = vmatprep.subr.bf16.mxu0 0
    %1768 = vmatpush1.bf16.msra.mxu0 0
    %1769 = vmatprep.subr.bf16.mxu0 0
    %1770 = vmatpush1.bf16.msra.mxu0 0
    %1771 = vmatprep.subr.bf16.mxu0 0
    %1772 = vmatpush1.bf16.msra.mxu0 0
    %1773 = vmatprep.subr.bf16.mxu0 0
    %1774 = vmatpush1.bf16.msra.mxu0 0
    %1775 = vmatprep.subr.bf16.mxu0 0
    %1776 = vmatpush1.bf16.msra.mxu0 0
    %1777 = vmatprep.subr.bf16.mxu0 0
    %1778 = vmatpush1.bf16.msra.mxu0 0
    %1779 = vmatprep.subr.bf16.mxu0 0
    %1780 = vmatpush1.bf16.msra.mxu0 %v1761
    %1781 = vmatprep.subr.bf16.mxu0 0
    %1782 = vmatpush1.bf16.msra.mxu0 %v1760
    %1783 = vmatprep.subr.bf16.mxu0 0
    %1784 = vmatpush2.bf16.msra.mxu0 0
    %1785 = vmatprep.subr.bf16.mxu0 0
    %1786 = vmatpush2.bf16.msra.mxu0 0
    %1787 = vmatprep.subr.bf16.mxu0 0
    %1788 = vmatpush2.bf16.msra.mxu0 0
    %1789 = vmatprep.subr.bf16.mxu0 0
    %1790 = vmatpush2.bf16.msra.mxu0 0
    %1791 = vmatprep.subr.bf16.mxu0 0
    %1792 = vmatpush2.bf16.msra.mxu0 0
    %1793 = vmatprep.subr.bf16.mxu0 0
    %1794 = vmatpush2.bf16.msra.mxu0 0
    %1795 = vmatprep.subr.bf16.mxu0 0
    %1796 = vmatpush2.bf16.msra.mxu0 0
    %1797 = vmatprep.subr.bf16.mxu0 0
    %1798 = vmatpush2.bf16.msra.mxu0 0
    %1799 = vmatprep.mubr.bf16.mxu0 0
    %1800 = vmatmul.mubr.bf16.gmra.mxu0 %v1765
    %v1801 = vpop.f32.mrf.mxu0
    %v1802 = vadd.f32 %v1750, %v1801
    %v1803 = vpop.f32.mrf.mxu0
    %v1804 = vpop.f32.mrf.mxu0
    %v1805 = vadd.f32 %v1750, %v1804
    %v1806 = vpop.f32.mrf.mxu0
    %1807 = vdwg.mxu0
    %v1808 = vadd.f32 %v1802, %v1668
    %v1809 = vadd.f32 %v1805, %v1669
    %v1810 = vmax.f32 %v1808, 0.0
    %v1811 = vmax.f32 %v1809, 0.0
    %v1812 = vpack.c.bf16 %v1811, %v1810
    %v1813 = vld [vmem:[#allocation7 + $0xc] sm:$0xff]
    %v1814 = vld [vmem:[#allocation7 + $0x20] sm:$0xff]
    %v1815 = vld [vmem:[#allocation7 + $0x34] sm:$0xff]
    %v1816 = vld [vmem:[#allocation7 + $0x48] sm:$0xff]
    %v1817 = vld [vmem:[#allocation11 + $0xa] sm:$0x3]
    %v1819 = vlaneseq
    %v1820 = vshrl.u32 %v1819, 7
    %v1821 = vsub.s32 0, %v1820
    %v1822 = vrot.slane %v1817, %v1821
    %v1823 = vlaneseq
    %v1824 = vshrl.u32 %v1823, 7
    %v1825 = vsub.s32 1, %v1824
    %v1826 = vrot.slane %v1817, %v1825
    %v1833 = vunpack.c.l.b16 %v1813
    %v1834 = vunpack.c.h.b16 %v1813
    %v1835 = vunpack.c.l.b16 %v1814
    %v1836 = vunpack.c.h.b16 %v1814
    %v1837 = vunpack.c.l.b16 %v1815
    %v1838 = vunpack.c.h.b16 %v1815
    %v1839 = vunpack.c.l.b16 %v1816
    %v1840 = vunpack.c.h.b16 %v1816
    %v1841 = vpack.c.b16 %v1835, %v1833
    %v1842 = vpack.c.b16 %v1836, %v1834
    %v1843 = vpack.c.b16 %v1839, %v1837
    %v1844 = vpack.c.b16 %v1840, %v1838
    %v1850 = vsel %vm554, %v1812, 0
    %1852 = vmatprep.subr.bf16.mxu0 0
    %1853 = vmatpush1.bf16.msra.mxu0 0
    %1854 = vmatprep.subr.bf16.mxu0 0
    %1855 = vmatpush1.bf16.msra.mxu0 0
    %1856 = vmatprep.subr.bf16.mxu0 0
    %1857 = vmatpush1.bf16.msra.mxu0 0
    %1858 = vmatprep.subr.bf16.mxu0 0
    %1859 = vmatpush1.bf16.msra.mxu0 0
    %1860 = vmatprep.subr.bf16.mxu0 0
    %1861 = vmatpush1.bf16.msra.mxu0 0
    %1862 = vmatprep.subr.bf16.mxu0 0
    %1863 = vmatpush1.bf16.msra.mxu0 0
    %1864 = vmatprep.subr.bf16.mxu0 %v1844
    %1865 = vmatpush1.bf16.msra.mxu0 %v1843
    %1866 = vmatprep.subr.bf16.mxu0 %v1842
    %1867 = vmatpush1.bf16.msra.mxu0 %v1841
    %1868 = vmatprep.subr.bf16.mxu0 0
    %1869 = vmatpush2.bf16.msra.mxu0 0
    %1870 = vmatprep.subr.bf16.mxu0 0
    %1871 = vmatpush2.bf16.msra.mxu0 0
    %1872 = vmatprep.subr.bf16.mxu0 0
    %1873 = vmatpush2.bf16.msra.mxu0 0
    %1874 = vmatprep.subr.bf16.mxu0 0
    %1875 = vmatpush2.bf16.msra.mxu0 0
    %1876 = vmatprep.subr.bf16.mxu0 0
    %1877 = vmatpush2.bf16.msra.mxu0 0
    %1878 = vmatprep.subr.bf16.mxu0 0
    %1879 = vmatpush2.bf16.msra.mxu0 0
    %1880 = vmatprep.subr.bf16.mxu0 0
    %1881 = vmatpush2.bf16.msra.mxu0 0
    %1882 = vmatprep.subr.bf16.mxu0 0
    %1883 = vmatpush2.bf16.msra.mxu0 0
    %1884 = vmatprep.mubr.bf16.mxu0 0
    %1885 = vmatmul.mubr.bf16.gmra.mxu0 %v1850
    %v1886 = vpop.f32.mrf.mxu0
    %v1887 = vadd.f32 %v1822, %v1886
    %v1888 = vpop.f32.mrf.mxu0
    %v1889 = vadd.f32 %v1826, %v1888
    %v1890 = vpop.f32.mrf.mxu0
    %v1891 = vadd.f32 %v1822, %v1890
    %v1892 = vpop.f32.mrf.mxu0
    %v1893 = vadd.f32 %v1826, %v1892
    %1894 = vdwg.mxu0
    %v1895 = vmax.f32 %v1887, 0.0
    %v1896 = vmax.f32 %v1891, 0.0
    %v1897 = vpack.c.bf16 %v1896, %v1895
    %v1898 = vld [vmem:[#allocation8] sm:$0xf]
    %v1899 = vld [vmem:[#allocation8 + $0x10] sm:$0xf]
    %v1900 = vld [vmem:[#allocation8 + $0x20] sm:$0xf]
    %v1901 = vld [vmem:[#allocation8 + $0x30] sm:$0xf]
    %v1902 = vld [vmem:[#allocation8 + $0x40] sm:$0xf]
    %v1903 = vld [vmem:[#allocation8 + $0x50] sm:$0xf]
    %v1904 = vld [vmem:[#allocation8 + $0x60] sm:$0xf]
    %v1905 = vld [vmem:[#allocation8 + $0x70] sm:$0xf]
    %v1906 = vld [vmem:[#allocation11 + $0xc] sm:$0x1]
    %v1908 = vlaneseq
    %v1909 = vshrl.u32 %v1908, 7
    %v1910 = vsub.s32 0, %v1909
    %v1911 = vrot.slane %v1906, %v1910
    %v1921 = vunpack.c.l.b16 %v1898
    %v1922 = vunpack.c.l.b16 %v1899
    %v1923 = vunpack.c.l.b16 %v1900
    %v1924 = vunpack.c.l.b16 %v1901
    %v1925 = vunpack.c.l.b16 %v1902
    %v1926 = vunpack.c.l.b16 %v1903
    %v1927 = vunpack.c.l.b16 %v1904
    %v1928 = vunpack.c.l.b16 %v1905
    %v1929 = vpack.c.b16 %v1922, %v1921
    %v1930 = vpack.c.b16 %v1924, %v1923
    %v1931 = vpack.c.b16 %v1926, %v1925
    %v1932 = vpack.c.b16 %v1928, %v1927
    %v1938 = vsel %vm870, %v1897, 0
    %1940 = vmatprep.subr.bf16.mxu0 0
    %1941 = vmatpush1.bf16.msra.mxu0 0
    %1942 = vmatprep.subr.bf16.mxu0 0
    %1943 = vmatpush1.bf16.msra.mxu0 0
    %1944 = vmatprep.subr.bf16.mxu0 0
    %1945 = vmatpush1.bf16.msra.mxu0 0
    %1946 = vmatprep.subr.bf16.mxu0 0
    %1947 = vmatpush1.bf16.msra.mxu0 0
    %1948 = vmatprep.subr.bf16.mxu0 0
    %1949 = vmatpush1.bf16.msra.mxu0 %v1932
    %1950 = vmatprep.subr.bf16.mxu0 0
    %1951 = vmatpush1.bf16.msra.mxu0 %v1931
    %1952 = vmatprep.subr.bf16.mxu0 0
    %1953 = vmatpush1.bf16.msra.mxu0 %v1930
    %1954 = vmatprep.subr.bf16.mxu0 0
    %1955 = vmatpush1.bf16.msra.mxu0 %v1929
    %1956 = vmatprep.subr.bf16.mxu0 0
    %1957 = vmatpush2.bf16.msra.mxu0 0
    %1958 = vmatprep.subr.bf16.mxu0 0
    %1959 = vmatpush2.bf16.msra.mxu0 0
    %1960 = vmatprep.subr.bf16.mxu0 0
    %1961 = vmatpush2.bf16.msra.mxu0 0
    %1962 = vmatprep.subr.bf16.mxu0 0
    %1963 = vmatpush2.bf16.msra.mxu0 0
    %1964 = vmatprep.subr.bf16.mxu0 0
    %1965 = vmatpush2.bf16.msra.mxu0 0
    %1966 = vmatprep.subr.bf16.mxu0 0
    %1967 = vmatpush2.bf16.msra.mxu0 0
    %1968 = vmatprep.subr.bf16.mxu0 0
    %1969 = vmatpush2.bf16.msra.mxu0 0
    %1970 = vmatprep.subr.bf16.mxu0 0
    %1971 = vmatpush2.bf16.msra.mxu0 0
    %1972 = vmatprep.mubr.bf16.mxu0 0
    %1973 = vmatmul.mubr.bf16.gmra.mxu0 %v1938
    %v1974 = vpop.f32.mrf.mxu0
    %v1975 = vadd.f32 %v1911, %v1974
    %v1976 = vpop.f32.mrf.mxu0
    %v1977 = vpop.f32.mrf.mxu0
    %v1978 = vadd.f32 %v1911, %v1977
    %v1979 = vpop.f32.mrf.mxu0
    %1980 = vdwg.mxu0
    %v1981 = vadd.f32 %v1975, %v1889
    %v1982 = vadd.f32 %v1978, %v1893
    %v1983 = vmax.f32 %v1981, 0.0
    %v1984 = vmax.f32 %v1982, 0.0
    %v1985 = vpack.c.bf16 %v1984, %v1983
    %v1986 = vld [vmem:[#allocation8 + $0x4] sm:$0xf]
    %v1987 = vld [vmem:[#allocation8 + $0x14] sm:$0xf]
    %v1988 = vld [vmem:[#allocation8 + $0x24] sm:$0xf]
    %v1989 = vld [vmem:[#allocation8 + $0x34] sm:$0xf]
    %v1990 = vld [vmem:[#allocation8 + $0x44] sm:$0xf]
    %v1991 = vld [vmem:[#allocation8 + $0x54] sm:$0xf]
    %v1992 = vld [vmem:[#allocation8 + $0x64] sm:$0xf]
    %v1993 = vld [vmem:[#allocation8 + $0x74] sm:$0xf]
    %v1994 = vld [vmem:[#allocation11 + $0xd] sm:$0x1]
    %v1996 = vlaneseq
    %v1997 = vshrl.u32 %v1996, 7
    %v1998 = vsub.s32 0, %v1997
    %v1999 = vrot.slane %v1994, %v1998
    %v2009 = vunpack.c.l.b16 %v1986
    %v2010 = vunpack.c.l.b16 %v1987
    %v2011 = vunpack.c.l.b16 %v1988
    %v2012 = vunpack.c.l.b16 %v1989
    %v2013 = vunpack.c.l.b16 %v1990
    %v2014 = vunpack.c.l.b16 %v1991
    %v2015 = vunpack.c.l.b16 %v1992
    %v2016 = vunpack.c.l.b16 %v1993
    %v2017 = vpack.c.b16 %v2010, %v2009
    %v2018 = vpack.c.b16 %v2012, %v2011
    %v2019 = vpack.c.b16 %v2014, %v2013
    %v2020 = vpack.c.b16 %v2016, %v2015
    %v2026 = vsel %vm870, %v1985, 0
    %2028 = vmatprep.subr.bf16.mxu0 0
    %2029 = vmatpush1.bf16.msra.mxu0 0
    %2030 = vmatprep.subr.bf16.mxu0 0
    %2031 = vmatpush1.bf16.msra.mxu0 0
    %2032 = vmatprep.subr.bf16.mxu0 0
    %2033 = vmatpush1.bf16.msra.mxu0 0
    %2034 = vmatprep.subr.bf16.mxu0 0
    %2035 = vmatpush1.bf16.msra.mxu0 0
    %2036 = vmatprep.subr.bf16.mxu0 0
    %2037 = vmatpush1.bf16.msra.mxu0 %v2020
    %2038 = vmatprep.subr.bf16.mxu0 0
    %2039 = vmatpush1.bf16.msra.mxu0 %v2019
    %2040 = vmatprep.subr.bf16.mxu0 0
    %2041 = vmatpush1.bf16.msra.mxu0 %v2018
    %2042 = vmatprep.subr.bf16.mxu0 0
    %2043 = vmatpush1.bf16.msra.mxu0 %v2017
    %2044 = vmatprep.subr.bf16.mxu0 0
    %2045 = vmatpush2.bf16.msra.mxu0 0
    %2046 = vmatprep.subr.bf16.mxu0 0
    %2047 = vmatpush2.bf16.msra.mxu0 0
    %2048 = vmatprep.subr.bf16.mxu0 0
    %2049 = vmatpush2.bf16.msra.mxu0 0
    %2050 = vmatprep.subr.bf16.mxu0 0
    %2051 = vmatpush2.bf16.msra.mxu0 0
    %2052 = vmatprep.subr.bf16.mxu0 0
    %2053 = vmatpush2.bf16.msra.mxu0 0
    %2054 = vmatprep.subr.bf16.mxu0 0
    %2055 = vmatpush2.bf16.msra.mxu0 0
    %2056 = vmatprep.subr.bf16.mxu0 0
    %2057 = vmatpush2.bf16.msra.mxu0 0
    %2058 = vmatprep.subr.bf16.mxu0 0
    %2059 = vmatpush2.bf16.msra.mxu0 0
    %2060 = vmatprep.mubr.bf16.mxu0 0
    %2061 = vmatmul.mubr.bf16.gmra.mxu0 %v2026
    %v2062 = vpop.f32.mrf.mxu0
    %v2063 = vadd.f32 %v1999, %v2062
    %v2064 = vpop.f32.mrf.mxu0
    %v2065 = vpop.f32.mrf.mxu0
    %v2066 = vadd.f32 %v1999, %v2065
    %v2067 = vpop.f32.mrf.mxu0
    %2068 = vdwg.mxu0
    %v2069 = vmax.f32 %v2063, 0.0
    %v2070 = vmax.f32 %v2066, 0.0
    %v2071 = vpack.c.bf16 %v2070, %v2069
    %v2072 = vld [vmem:[#allocation8 + $0x8] sm:$0xf]
    %v2073 = vld [vmem:[#allocation8 + $0x18] sm:$0xf]
    %v2074 = vld [vmem:[#allocation8 + $0x28] sm:$0xf]
    %v2075 = vld [vmem:[#allocation8 + $0x38] sm:$0xf]
    %v2076 = vld [vmem:[#allocation8 + $0x48] sm:$0xf]
    %v2077 = vld [vmem:[#allocation8 + $0x58] sm:$0xf]
    %v2078 = vld [vmem:[#allocation8 + $0x68] sm:$0xf]
    %v2079 = vld [vmem:[#allocation8 + $0x78] sm:$0xf]
    %v2080 = vld [vmem:[#allocation11 + $0xe] sm:$0x1]
    %v2082 = vlaneseq
    %v2083 = vshrl.u32 %v2082, 7
    %v2084 = vsub.s32 0, %v2083
    %v2085 = vrot.slane %v2080, %v2084
    %v2095 = vunpack.c.l.b16 %v2072
    %v2096 = vunpack.c.l.b16 %v2073
    %v2097 = vunpack.c.l.b16 %v2074
    %v2098 = vunpack.c.l.b16 %v2075
    %v2099 = vunpack.c.l.b16 %v2076
    %v2100 = vunpack.c.l.b16 %v2077
    %v2101 = vunpack.c.l.b16 %v2078
    %v2102 = vunpack.c.l.b16 %v2079
    %v2103 = vpack.c.b16 %v2096, %v2095
    %v2104 = vpack.c.b16 %v2098, %v2097
    %v2105 = vpack.c.b16 %v2100, %v2099
    %v2106 = vpack.c.b16 %v2102, %v2101
    %v2112 = vsel %vm870, %v2071, 0
    %2114 = vmatprep.subr.bf16.mxu0 0
    %2115 = vmatpush1.bf16.msra.mxu0 0
    %2116 = vmatprep.subr.bf16.mxu0 0
    %2117 = vmatpush1.bf16.msra.mxu0 0
    %2118 = vmatprep.subr.bf16.mxu0 0
    %2119 = vmatpush1.bf16.msra.mxu0 0
    %2120 = vmatprep.subr.bf16.mxu0 0
    %2121 = vmatpush1.bf16.msra.mxu0 0
    %2122 = vmatprep.subr.bf16.mxu0 0
    %2123 = vmatpush1.bf16.msra.mxu0 %v2106
    %2124 = vmatprep.subr.bf16.mxu0 0
    %2125 = vmatpush1.bf16.msra.mxu0 %v2105
    %2126 = vmatprep.subr.bf16.mxu0 0
    %2127 = vmatpush1.bf16.msra.mxu0 %v2104
    %2128 = vmatprep.subr.bf16.mxu0 0
    %2129 = vmatpush1.bf16.msra.mxu0 %v2103
    %2130 = vmatprep.subr.bf16.mxu0 0
    %2131 = vmatpush2.bf16.msra.mxu0 0
    %2132 = vmatprep.subr.bf16.mxu0 0
    %2133 = vmatpush2.bf16.msra.mxu0 0
    %2134 = vmatprep.subr.bf16.mxu0 0
    %2135 = vmatpush2.bf16.msra.mxu0 0
    %2136 = vmatprep.subr.bf16.mxu0 0
    %2137 = vmatpush2.bf16.msra.mxu0 0
    %2138 = vmatprep.subr.bf16.mxu0 0
    %2139 = vmatpush2.bf16.msra.mxu0 0
    %2140 = vmatprep.subr.bf16.mxu0 0
    %2141 = vmatpush2.bf16.msra.mxu0 0
    %2142 = vmatprep.subr.bf16.mxu0 0
    %2143 = vmatpush2.bf16.msra.mxu0 0
    %2144 = vmatprep.subr.bf16.mxu0 0
    %2145 = vmatpush2.bf16.msra.mxu0 0
    %2146 = vmatprep.mubr.bf16.mxu0 0
    %2147 = vmatmul.mubr.bf16.gmra.mxu0 %v2112
    %v2148 = vpop.f32.mrf.mxu0
    %v2149 = vadd.f32 %v2085, %v2148
    %v2150 = vpop.f32.mrf.mxu0
    %v2151 = vpop.f32.mrf.mxu0
    %v2152 = vadd.f32 %v2085, %v2151
    %v2153 = vpop.f32.mrf.mxu0
    %2154 = vdwg.mxu0
    %v2155 = vadd.f32 %v2149, %v1983
    %v2156 = vadd.f32 %v2152, %v1984
    %v2157 = vmax.f32 %v2155, 0.0
    %v2158 = vmax.f32 %v2156, 0.0
    %2159 = vst [vmem:[#allocation14 + $0x10] sm:$0xff] %v2157
    %2160 = vst [vmem:[#allocation14 + $0x18] sm:$0xff] %v2158
    %v2161 = vpack.c.bf16 %v2158, %v2157
    %v2162 = vld [vmem:[#allocation8 + $0xc] sm:$0xf]
    %v2163 = vld [vmem:[#allocation8 + $0x1c] sm:$0xf]
    %v2164 = vld [vmem:[#allocation8 + $0x2c] sm:$0xf]
    %v2165 = vld [vmem:[#allocation8 + $0x3c] sm:$0xf]
    %v2166 = vld [vmem:[#allocation8 + $0x4c] sm:$0xf]
    %v2167 = vld [vmem:[#allocation8 + $0x5c] sm:$0xf]
    %v2168 = vld [vmem:[#allocation8 + $0x6c] sm:$0xf]
    %v2169 = vld [vmem:[#allocation8 + $0x7c] sm:$0xf]
    %v2170 = vld [vmem:[#allocation11 + $0xf] sm:$0x1]
    %v2172 = vlaneseq
    %v2173 = vshrl.u32 %v2172, 7
    %v2174 = vsub.s32 0, %v2173
    %v2175 = vrot.slane %v2170, %v2174
    %v2185 = vunpack.c.l.b16 %v2162
    %v2186 = vunpack.c.l.b16 %v2163
    %v2187 = vunpack.c.l.b16 %v2164
    %v2188 = vunpack.c.l.b16 %v2165
    %v2189 = vunpack.c.l.b16 %v2166
    %v2190 = vunpack.c.l.b16 %v2167
    %v2191 = vunpack.c.l.b16 %v2168
    %v2192 = vunpack.c.l.b16 %v2169
    %v2193 = vpack.c.b16 %v2186, %v2185
    %v2194 = vpack.c.b16 %v2188, %v2187
    %v2195 = vpack.c.b16 %v2190, %v2189
    %v2196 = vpack.c.b16 %v2192, %v2191
    %v2202 = vsel %vm870, %v2161, 0
    %2204 = vmatprep.subr.bf16.mxu0 0
    %2205 = vmatpush1.bf16.msra.mxu0 0
    %2206 = vmatprep.subr.bf16.mxu0 0
    %2207 = vmatpush1.bf16.msra.mxu0 0
    %2208 = vmatprep.subr.bf16.mxu0 0
    %2209 = vmatpush1.bf16.msra.mxu0 0
    %2210 = vmatprep.subr.bf16.mxu0 0
    %2211 = vmatpush1.bf16.msra.mxu0 0
    %2212 = vmatprep.subr.bf16.mxu0 0
    %2213 = vmatpush1.bf16.msra.mxu0 %v2196
    %2214 = vmatprep.subr.bf16.mxu0 0
    %2215 = vmatpush1.bf16.msra.mxu0 %v2195
    %2216 = vmatprep.subr.bf16.mxu0 0
    %2217 = vmatpush1.bf16.msra.mxu0 %v2194
    %2218 = vmatprep.subr.bf16.mxu0 0
    %2219 = vmatpush1.bf16.msra.mxu0 %v2193
    %2220 = vmatprep.subr.bf16.mxu0 0
    %2221 = vmatpush2.bf16.msra.mxu0 0
    %2222 = vmatprep.subr.bf16.mxu0 0
    %2223 = vmatpush2.bf16.msra.mxu0 0
    %2224 = vmatprep.subr.bf16.mxu0 0
    %2225 = vmatpush2.bf16.msra.mxu0 0
    %2226 = vmatprep.subr.bf16.mxu0 0
    %2227 = vmatpush2.bf16.msra.mxu0 0
    %2228 = vmatprep.subr.bf16.mxu0 0
    %2229 = vmatpush2.bf16.msra.mxu0 0
    %2230 = vmatprep.subr.bf16.mxu0 0
    %2231 = vmatpush2.bf16.msra.mxu0 0
    %2232 = vmatprep.subr.bf16.mxu0 0
    %2233 = vmatpush2.bf16.msra.mxu0 0
    %2234 = vmatprep.subr.bf16.mxu0 0
    %2235 = vmatpush2.bf16.msra.mxu0 0
    %2236 = vmatprep.mubr.bf16.mxu0 0
    %2237 = vmatmul.mubr.bf16.gmra.mxu0 %v2202
    %v2238 = vpop.f32.mrf.mxu0
    %v2239 = vadd.f32 %v2175, %v2238
    %v2240 = vpop.f32.mrf.mxu0
    %v2241 = vpop.f32.mrf.mxu0
    %v2242 = vadd.f32 %v2175, %v2241
    %v2243 = vpop.f32.mrf.mxu0
    %2244 = vdwg.mxu0
    %2245 = vst [vmem:[#allocation13 + $0x10] sm:$0xff] %v2239
    %2246 = vst [vmem:[#allocation13 + $0x18] sm:$0xff] %v2242
    // Predicated region
    $region50: #{tpu_custom_call.1} parent=1 // pred_check
      _
    $region51: #{tpu_custom_call.1} parent=1 // pred_check_branch
      %2248 = sbr.rel (0) target = $region53
    $region52: #{tpu_custom_call.1} parent=1 // pred_region
      %s2250 = ssub.s32 512, 512
      %2251 = vsyncadd [#allocation4], %s2250
      %s2252 = sshll.u32 [#allocation13], 4
      %s2253 = int_to_ptr.vmem [resolvable:$true] %s2252
      %2258 = dma.vmem_to_hbm [thread:$0]  %s2253, 512, %s6, [#allocation4], 128, 128, 8
    $region53: #{tpu_custom_call.1} parent=1 // pred_fallthru
      _
    // Predicated region
    $region54: #{tpu_custom_call.1} parent=1 // pred_check
      _
    $region55: #{tpu_custom_call.1} parent=1 // pred_check_branch
      %2260 = sbr.rel (0) target = $region57
    $region56: #{tpu_custom_call.1} parent=1 // pred_region
      %s2262 = ssub.s32 512, 512
      %2263 = vsyncadd [#allocation15], %s2262
      %s2264 = sshll.u32 [#allocation14], 4
      %s2265 = int_to_ptr.vmem [resolvable:$true] %s2264
      %2270 = dma.vmem_to_hbm [thread:$0]  %s2265, 512, %s7, [#allocation15], 128, 128, 8
    $region57: #{tpu_custom_call.1} parent=1 // pred_fallthru
      _
    // Predicated region
    $region58: #{tpu_custom_call.1} parent=1 // pred_check
      _
    $region59: #{tpu_custom_call.1} parent=1 // pred_check_branch
      %2272 = sbr.rel (0) target = $region61
    $region60: #{tpu_custom_call.1} parent=1 // pred_region
      %2273 = dma.done [#allocation4], 512
    $region61: #{tpu_custom_call.1} parent=1 // pred_fallthru
      _
    // Predicated region
    $region62: #{tpu_custom_call.1} parent=1 // pred_check
      _
    $region63: #{tpu_custom_call.1} parent=1 // pred_check_branch
      %2275 = sbr.rel (0) target = $region65
    $region64: #{tpu_custom_call.1} parent=1 // pred_region
      %2276 = dma.done [#allocation15], 512
    $region65: #{tpu_custom_call.1} parent=1 // pred_fallthru
      _
    %2277 = vsyncpa [#allocation3], 1
    %2278 = vsyncpa [#allocation6], 1
    %2279 = vsyncpa [#allocation9], 1
    %2280 = vsyncpa [#allocation12], 1
    %2281 = vsyncpa [#allocation4], 1
    %2282 = vsyncpa [#allocation15], 1

</llo_original>
